<compile_context>
chip_gen: v6e
topology: v6e:2x2x1
jax: 0.10.0
libtpu: 0.0.40
codegen_flags: <defaults>
</compile_context>

<pallas_src>
import jax
import jax.numpy as jnp
from jax.experimental import pallas as pl
from jax.experimental.pallas import tpu as pltpu


# ----------------------------------------------------------------------------
# Helpers
# ----------------------------------------------------------------------------
def _round_up(n, m):
    return ((n + m - 1) // m) * m


def _pick_chunk(T, max_chunk):
    c = min(T, max_chunk)
    while T % c:
        c -= 1
    return c


def _lstm_cell(gates, c, H):
    """Gate columns pre-permuted to [i, f, o, g]."""
    ifo = jax.nn.sigmoid(gates[:, : 3 * H])
    g = jnp.tanh(gates[:, 3 * H:])
    i = ifo[:, 0 * H:1 * H]
    f = ifo[:, 1 * H:2 * H]
    o = ifo[:, 2 * H:3 * H]
    c_new = f * c + i * g
    h_new = o * jnp.tanh(c_new)
    return h_new, c_new


# ----------------------------------------------------------------------------
# Kernel 1: LSTM layer (fused input projection + recurrence), emits the full
# hidden sequence for the next layer.  One grid step == one chunk of
# timesteps; h/c carried in VMEM scratch across chunks.
# ----------------------------------------------------------------------------
def _lstm_seq_kernel(x_ref, wih_ref, b_ref, whh_ref, out_ref,
                     gx_ref, h_ref, c_ref):
    ci = pl.program_id(0)

    @pl.when(ci == 0)
    def _():
        h_ref[...] = jnp.zeros_like(h_ref)
        c_ref[...] = jnp.zeros_like(c_ref)

    chunk, Bp, H = out_ref.shape

    # Fused, hoisted input projection for the whole chunk: one 2-D MXU matmul,
    # result stays in VMEM (never written to HBM).
    gx_ref[...] = (
        jnp.dot(x_ref[...], wih_ref[...], preferred_element_type=jnp.float32)
        + b_ref[...]
    )

    # TODO(synk): index whh_ref directly inside the dot once H >= 128 to avoid
    #             pinning the weight in vregs across the unrolled loop.
    whh = whh_ref[...]

    def step(t, carry):
        h, c = carry
        r0 = pl.multiple_of(t * Bp, Bp)
        gates = gx_ref[pl.ds(r0, Bp), :] + jnp.dot(
            h, whh, preferred_element_type=jnp.float32)
        h_new, c_new = _lstm_cell(gates, c, H)
        out_ref[t] = h_new                 # VMEM slab; one HBM DMA per chunk
        return (h_new, c_new)

    unroll = True if chunk <= 32 else 8
    h, c = jax.lax.fori_loop(0, chunk, step, (h_ref[...], c_ref[...]),
                             unroll=unroll)
    h_ref[...] = h
    c_ref[...] = c


def lstm_layer(x2d, w_ih_t, b_row, w_hh_t, T, Bp, *, max_chunk=128):
    """x2d: (T*Bp, D) time-major rows; returns hidden sequence (T, Bp, H)."""
    D = x2d.shape[1]
    H4 = w_ih_t.shape[1]
    H = w_hh_t.shape[0]
    chunk = _pick_chunk(T, max_chunk)
    return pl.pallas_call(
        _lstm_seq_kernel,
        out_shape=jax.ShapeDtypeStruct((T, Bp, H), jnp.float32),
        grid_spec=pltpu.PrefetchScalarGridSpec(
            num_scalar_prefetch=0,
            grid=(T // chunk,),
            in_specs=[
                pl.BlockSpec((chunk * Bp, D), lambda ci: (ci, 0)),  # x chunk
                pl.BlockSpec((D, H4), lambda ci: (0, 0)),           # W_ih^T resident
                pl.BlockSpec((1, H4), lambda ci: (0, 0)),           # fused bias
                pl.BlockSpec((H, H4), lambda ci: (0, 0)),           # W_hh^T resident
            ],
            out_specs=pl.BlockSpec((chunk, Bp, H), lambda ci: (ci, 0, 0)),
            scratch_shapes=[
                pltpu.VMEM((chunk * Bp, H4), jnp.float32),           # gx chunk
                pltpu.VMEM((Bp, H), jnp.float32),                    # h carry
                pltpu.VMEM((Bp, H), jnp.float32),                    # c carry
            ],
        ),
        compiler_params=pltpu.CompilerParams(
            dimension_semantics=("arbitrary",)),                     # sequential carry
    )(x2d, w_ih_t, b_row, w_hh_t)


# ----------------------------------------------------------------------------
# Kernel 2: last LSTM layer with the final Linear fused in.  Only the final
# (Bp, O) FC result ever leaves the kernel.
# ----------------------------------------------------------------------------
def _lstm_last_fc_kernel(x_ref, wih_ref, b_ref, whh_ref, fcw_ref, fcb_ref,
                         out_ref, gx_ref, h_ref, c_ref):
    ci = pl.program_id(0)

    @pl.when(ci == 0)
    def _():
        h_ref[...] = jnp.zeros_like(h_ref)
        c_ref[...] = jnp.zeros_like(c_ref)

    Bp, H = h_ref.shape
    chunk = gx_ref.shape[0] // Bp

    gx_ref[...] = (
        jnp.dot(x_ref[...], wih_ref[...], preferred_element_type=jnp.float32)
        + b_ref[...]
    )
    whh = whh_ref[...]

    def step(t, carry):
        h, c = carry
        r0 = pl.multiple_of(t * Bp, Bp)
        gates = gx_ref[pl.ds(r0, Bp), :] + jnp.dot(
            h, whh, preferred_element_type=jnp.float32)
        return _lstm_cell(gates, c, H)

    unroll = True if chunk <= 32 else 8
    h, c = jax.lax.fori_loop(0, chunk, step, (h_ref[...], c_ref[...]),
                             unroll=unroll)
    h_ref[...] = h
    c_ref[...] = c

    @pl.when(ci == pl.num_programs(0) - 1)
    def _():
        out_ref[...] = (
            jnp.dot(h, fcw_ref[...], preferred_element_type=jnp.float32)
            + fcb_ref[...]
        )


def lstm_last_layer_fused_fc(x2d, w_ih_t, b_row, w_hh_t, fc_w_t, fc_b_row,
                             T, Bp, *, max_chunk=128):
    D = x2d.shape[1]
    H4 = w_ih_t.shape[1]
    H = w_hh_t.shape[0]
    O = fc_w_t.shape[1]
    chunk = _pick_chunk(T, max_chunk)
    return pl.pallas_call(
        _lstm_last_fc_kernel,
        out_shape=jax.ShapeDtypeStruct((Bp, O), jnp.float32),
        grid_spec=pltpu.PrefetchScalarGridSpec(
            num_scalar_prefetch=0,
            grid=(T // chunk,),
            in_specs=[
                pl.BlockSpec((chunk * Bp, D), lambda ci: (ci, 0)),
                pl.BlockSpec((D, H4), lambda ci: (0, 0)),
                pl.BlockSpec((1, H4), lambda ci: (0, 0)),
                pl.BlockSpec((H, H4), lambda ci: (0, 0)),
                pl.BlockSpec((H, O), lambda ci: (0, 0)),
                pl.BlockSpec((1, O), lambda ci: (0, 0)),
            ],
            out_specs=pl.BlockSpec((Bp, O), lambda ci: (0, 0)),      # resident
            scratch_shapes=[
                pltpu.VMEM((chunk * Bp, H4), jnp.float32),
                pltpu.VMEM((Bp, H), jnp.float32),
                pltpu.VMEM((Bp, H), jnp.float32),
            ],
        ),
        compiler_params=pltpu.CompilerParams(
            dimension_semantics=("arbitrary",)),
    )(x2d, w_ih_t, b_row, w_hh_t, fc_w_t, fc_b_row)


# ----------------------------------------------------------------------------
# Parameter prep (once, outside the forward): transpose weights, fuse biases,
# permute PyTorch gate order [i,f,g,o] -> [i,f,o,g].
# ----------------------------------------------------------------------------
def _reorder_gate_rows(a):
    H = a.shape[0] // 4
    return jnp.concatenate([a[: 2 * H], a[3 * H:], a[2 * H:3 * H]], axis=0)


def prepare_params(lstm_params, fc_w, fc_b):
    prepped = []
    for (w_ih, w_hh, b_ih, b_hh) in lstm_params:
        w_ih_t = _reorder_gate_rows(w_ih).T            # (D_in, 4H)
        w_hh_t = _reorder_gate_rows(w_hh).T            # (H, 4H)
        b_row = _reorder_gate_rows(b_ih + b_hh)[None]  # (1, 4H)
        prepped.append((w_ih_t, w_hh_t, b_row))
    return prepped, fc_w.T, fc_b[None, :]


# ----------------------------------------------------------------------------
# Full model forward (glue in plain JAX).
# ----------------------------------------------------------------------------
@jax.jit
def lstm_model_forward(x_btd, prepped):
    lstm_prepped, fc_w_t, fc_b_row = prepped
    B, T, D = x_btd.shape
    Bp = _round_up(B, 8)                               # sublane-multiple batch
    # TODO(synk): fold this one-time input transpose into the first layer's
    #             index_map for very large inputs; negligible here.
    x = jnp.transpose(x_btd, (1, 0, 2))                # (T, B, D) time-major
    if Bp != B:
        x = jnp.pad(x, ((0, 0), (0, Bp - B), (0, 0)))
    x2d = x.reshape(T * Bp, D)                         # contiguous -> free

    n_layers = len(lstm_prepped)
    out = None
    for li, (w_ih_t, w_hh_t, b_row) in enumerate(lstm_prepped):
        if li == n_layers - 1:
            out = lstm_last_layer_fused_fc(
                x2d, w_ih_t, b_row, w_hh_t, fc_w_t, fc_b_row, T, Bp)
        else:
            seq = lstm_layer(x2d, w_ih_t, b_row, w_hh_t, T, Bp)
            x2d = seq.reshape(T * Bp, seq.shape[-1])   # contiguous -> free
    return out[:B]


# ----------------------------------------------------------------------------
# Pure-JAX reference (PyTorch LSTM semantics, original [i,f,g,o] gate order).
# ----------------------------------------------------------------------------
def lstm_model_ref(x_btd, lstm_params, fc_w, fc_b):
    B = x_btd.shape[0]
    seq = x_btd
    for (w_ih, w_hh, b_ih, b_hh) in lstm_params:
        H = w_hh.shape[1]

        def step(carry, x_t):
            h, c = carry
            gates = x_t @ w_ih.T + b_ih + h @ w_hh.T + b_hh
            i, f, g, o = jnp.split(gates, 4, axis=-1)
            i = jax.nn.sigmoid(i)
            f = jax.nn.sigmoid(f)
            g = jnp.tanh(g)
            o = jax.nn.sigmoid(o)
            c = f * c + i * g
            h = o * jnp.tanh(c)
            return (h, c), h

        h0 = jnp.zeros((B, H), jnp.float32)
        c0 = jnp.zeros((B, H), jnp.float32)
        _, hs = jax.lax.scan(step, (h0, c0), jnp.transpose(seq, (1, 0, 2)))
        seq = jnp.transpose(hs, (1, 0, 2))
    return seq[:, -1, :] @ fc_w.T + fc_b


def init_params(key, input_dim, hidden_dim, layer_dim, output_dim):
    """Deterministic init mirroring PyTorch shapes: U(-1/sqrt(H), 1/sqrt(H))."""
    k = 1.0 / jnp.sqrt(jnp.float32(hidden_dim))
    lstm_params = []
    for layer in range(layer_dim):
        d_in = input_dim if layer == 0 else hidden_dim
        key, k1, k2, k3, k4 = jax.random.split(key, 5)
        w_ih = jax.random.uniform(k1, (4 * hidden_dim, d_in), jnp.float32, -k, k)
        w_hh = jax.random.uniform(k2, (4 * hidden_dim, hidden_dim), jnp.float32, -k, k)
        b_ih = jax.random.uniform(k3, (4 * hidden_dim,), jnp.float32, -k, k)
        b_hh = jax.random.uniform(k4, (4 * hidden_dim,), jnp.float32, -k, k)
        lstm_params.append((w_ih, w_hh, b_ih, b_hh))
    key, k5, k6 = jax.random.split(key, 3)
    kf = 1.0 / jnp.sqrt(jnp.float32(hidden_dim))
    fc_w = jax.random.uniform(k5, (output_dim, hidden_dim), jnp.float32, -kf, kf)
    fc_b = jax.random.uniform(k6, (output_dim,), jnp.float32, -kf, kf)
    return lstm_params, fc_w, fc_b


if __name__ == "__main__":
    B, T = 2, 8
    input_dim, hidden_dim, layer_dim, output_dim = 16, 32, 2, 4

    key = jax.random.PRNGKey(0)
    key, xk = jax.random.split(key)
    x = jax.random.normal(xk, (B, T, input_dim), jnp.float32)

    lstm_params, fc_w, fc_b = init_params(
        key, input_dim, hidden_dim, layer_dim, output_dim)
    prepped = prepare_params(lstm_params, fc_w, fc_b)

    out = lstm_model_forward(x, prepped)
    out = jax.block_until_ready(out)

    ref = lstm_model_ref(x, lstm_params, fc_w, fc_b)
    assert out.shape == (B, output_dim)
    assert jnp.allclose(out, ref, atol=1e-4, rtol=1e-4), (out, ref)

    print("KERNEL_OK")
</pallas_src>

<mosaic_0001>
module attributes {stable_mosaic.version = 11 : i64} {
  func.func @_lstm_seq_kernel(%arg0: i32, %arg1: memref<64x16xf32, #tpu.memory_space<vmem>>, %arg2: memref<16x128xf32, #tpu.memory_space<vmem>>, %arg3: memref<1x128xf32, #tpu.memory_space<vmem>>, %arg4: memref<32x128xf32, #tpu.memory_space<vmem>>, %arg5: memref<8x8x32xf32, #tpu.memory_space<vmem>>, %arg6: memref<64x128xf32, #tpu.memory_space<vmem>>, %arg7: memref<8x32xf32, #tpu.memory_space<vmem>>, %arg8: memref<8x32xf32, #tpu.memory_space<vmem>>) attributes {dimension_semantics = [#tpu.dimension_semantics<arbitrary>], iteration_bounds = array<i64: 1>, scalar_prefetch = 0 : i64, scratch_operands = 3 : i64, tpu.core_type = #tpu.core_type<tc>, window_params = [{transform_indices = @transform_0, window_bounds = array<i64: 64, 16>}, {pipeline_mode = #tpu.pipeline_mode<synchronous>, transform_indices = @transform_1, window_bounds = array<i64: 16, 128>}, {pipeline_mode = #tpu.pipeline_mode<synchronous>, transform_indices = @transform_2, window_bounds = array<i64: 1, 128>}, {pipeline_mode = #tpu.pipeline_mode<synchronous>, transform_indices = @transform_3, window_bounds = array<i64: 32, 128>}, {transform_indices = @transform_4, window_bounds = array<i64: 8, 8, 32>}]} {
    %c0_i32 = arith.constant 0 : i32
    %0 = arith.cmpi eq, %arg0, %c0_i32 : i32
    %1 = arith.extui %0 : i1 to i32
    %c0_i32_0 = arith.constant 0 : i32
    %2 = arith.cmpi ne, %1, %c0_i32_0 : i32
    scf.if %2 {
      %cst_67 = arith.constant 0.000000e+00 : f32
      %223 = vector.broadcast %cst_67 : f32 to vector<8x32xf32>
      %c0_68 = arith.constant 0 : index
      %c0_69 = arith.constant 0 : index
      %224 = vector.load %arg7[%c0_68, %c0_69] : memref<8x32xf32, #tpu.memory_space<vmem>>, vector<8x32xf32>
      tpu.vector_store %arg7[%c0_68, %c0_69], %223 {strides = array<i32>} : memref<8x32xf32, #tpu.memory_space<vmem>>, vector<8x32xf32>,
      %cst_70 = arith.constant 0.000000e+00 : f32
      %225 = vector.broadcast %cst_70 : f32 to vector<8x32xf32>
      %c0_71 = arith.constant 0 : index
      %c0_72 = arith.constant 0 : index
      %226 = vector.load %arg8[%c0_71, %c0_72] : memref<8x32xf32, #tpu.memory_space<vmem>>, vector<8x32xf32>
      tpu.vector_store %arg8[%c0_71, %c0_72], %225 {strides = array<i32>} : memref<8x32xf32, #tpu.memory_space<vmem>>, vector<8x32xf32>,
    } else {
    }
    %c0 = arith.constant 0 : index
    %c0_1 = arith.constant 0 : index
    %3 = vector.load %arg1[%c0, %c0_1] : memref<64x16xf32, #tpu.memory_space<vmem>>, vector<64x16xf32>
    %c0_2 = arith.constant 0 : index
    %c0_3 = arith.constant 0 : index
    %4 = vector.load %arg2[%c0_2, %c0_3] : memref<16x128xf32, #tpu.memory_space<vmem>>, vector<16x128xf32>
    %cst = arith.constant dense<0.000000e+00> : vector<64x128xf32>
    %5 = tpu.matmul %3, %4, %cst {dimension_numbers = #tpu.dot_dimension_numbers<[1], [0], [0], [1], [0, 0, 1, 1], [], []>} : vector<64x16xf32>, vector<16x128xf32>, vector<64x128xf32> -> vector<64x128xf32>
    %c0_4 = arith.constant 0 : index
    %c0_5 = arith.constant 0 : index
    %6 = vector.load %arg3[%c0_4, %c0_5] : memref<1x128xf32, #tpu.memory_space<vmem>>, vector<1x128xf32>
    %7 = vector.broadcast %6 : vector<1x128xf32> to vector<64x128xf32>
    %8 = arith.addf %5, %7 : vector<64x128xf32>
    %c0_6 = arith.constant 0 : index
    %c0_7 = arith.constant 0 : index
    %9 = vector.load %arg6[%c0_6, %c0_7] : memref<64x128xf32, #tpu.memory_space<vmem>>, vector<64x128xf32>
    tpu.vector_store %arg6[%c0_6, %c0_7], %8 {strides = array<i32>} : memref<64x128xf32, #tpu.memory_space<vmem>>, vector<64x128xf32>,
    %c0_8 = arith.constant 0 : index
    %c0_9 = arith.constant 0 : index
    %10 = vector.load %arg4[%c0_8, %c0_9] : memref<32x128xf32, #tpu.memory_space<vmem>>, vector<32x128xf32>
    %c0_10 = arith.constant 0 : index
    %c0_11 = arith.constant 0 : index
    %11 = vector.load %arg7[%c0_10, %c0_11] : memref<8x32xf32, #tpu.memory_space<vmem>>, vector<8x32xf32>
    %c0_12 = arith.constant 0 : index
    %c0_13 = arith.constant 0 : index
    %12 = vector.load %arg8[%c0_12, %c0_13] : memref<8x32xf32, #tpu.memory_space<vmem>>, vector<8x32xf32>
    %c0_i32_14 = arith.constant 0 : i32
    %c8_i32 = arith.constant 8 : i32
    %13 = arith.muli %c0_i32_14, %c8_i32 : i32
    %14 = tpu.assume_multiple %13, 8 : i32
    %15 = arith.index_cast %14 : i32 to index
    %c0_15 = arith.constant 0 : index
    %16 = vector.load %arg6[%15, %c0_15] : memref<64x128xf32, #tpu.memory_space<vmem>>, vector<8x128xf32>
    %cst_16 = arith.constant dense<0.000000e+00> : vector<8x128xf32>
    %17 = tpu.matmul %11, %10, %cst_16 {dimension_numbers = #tpu.dot_dimension_numbers<[1], [0], [0], [1], [0, 0, 1, 1], [], []>} : vector<8x32xf32>, vector<32x128xf32>, vector<8x128xf32> -> vector<8x128xf32>
    %18 = arith.addf %16, %17 : vector<8x128xf32>
    %19 = vector.extract_strided_slice %18 {offsets = [0, 0], sizes = [8, 96], strides = [1, 1]} : vector<8x128xf32> to vector<8x96xf32>
    %20 = arith.negf %19 : vector<8x96xf32>
    %21 = math.exp %20 : vector<8x96xf32>
    %cst_17 = arith.constant 1.000000e+00 : f32
    %22 = vector.broadcast %cst_17 : f32 to vector<8x96xf32>
    %23 = arith.addf %22, %21 : vector<8x96xf32>
    %24 = arith.divf %22, %23 : vector<8x96xf32>
    %25 = vector.extract_strided_slice %18 {offsets = [0, 96], sizes = [8, 32], strides = [1, 1]} : vector<8x128xf32> to vector<8x32xf32>
    %26 = math.tanh %25 : vector<8x32xf32>
    %27 = vector.extract_strided_slice %24 {offsets = [0, 0], sizes = [8, 32], strides = [1, 1]} : vector<8x96xf32> to vector<8x32xf32>
    %28 = vector.extract_strided_slice %24 {offsets = [0, 32], sizes = [8, 32], strides = [1, 1]} : vector<8x96xf32> to vector<8x32xf32>
    %29 = vector.extract_strided_slice %24 {offsets = [0, 64], sizes = [8, 32], strides = [1, 1]} : vector<8x96xf32> to vector<8x32xf32>
    %30 = arith.mulf %28, %12 : vector<8x32xf32>
    %31 = arith.mulf %27, %26 : vector<8x32xf32>
    %32 = arith.addf %30, %31 : vector<8x32xf32>
    %33 = math.tanh %32 : vector<8x32xf32>
    %34 = arith.mulf %29, %33 : vector<8x32xf32>
    %35 = arith.index_cast %c0_i32_14 : i32 to index
    %c0_18 = arith.constant 0 : index
    %c0_19 = arith.constant 0 : index
    %36 = vector.load %arg5[%35, %c0_18, %c0_19] : memref<8x8x32xf32, #tpu.memory_space<vmem>>, vector<1x8x32xf32>
    %37 = vector.shape_cast %36 : vector<1x8x32xf32> to vector<8x32xf32>
    %38 = vector.shape_cast %34 : vector<8x32xf32> to vector<1x8x32xf32>
    tpu.vector_store %arg5[%35, %c0_18, %c0_19], %38 {strides = array<i32>} : memref<8x8x32xf32, #tpu.memory_space<vmem>>, vector<1x8x32xf32>,
    %c1_i32 = arith.constant 1 : i32
    %c8_i32_20 = arith.constant 8 : i32
    %39 = arith.muli %c1_i32, %c8_i32_20 : i32
    %40 = tpu.assume_multiple %39, 8 : i32
    %41 = arith.index_cast %40 : i32 to index
    %c0_21 = arith.constant 0 : index
    %42 = vector.load %arg6[%41, %c0_21] : memref<64x128xf32, #tpu.memory_space<vmem>>, vector<8x128xf32>
    %cst_22 = arith.constant dense<0.000000e+00> : vector<8x128xf32>
    %43 = tpu.matmul %34, %10, %cst_22 {dimension_numbers = #tpu.dot_dimension_numbers<[1], [0], [0], [1], [0, 0, 1, 1], [], []>} : vector<8x32xf32>, vector<32x128xf32>, vector<8x128xf32> -> vector<8x128xf32>
    %44 = arith.addf %42, %43 : vector<8x128xf32>
    %45 = vector.extract_strided_slice %44 {offsets = [0, 0], sizes = [8, 96], strides = [1, 1]} : vector<8x128xf32> to vector<8x96xf32>
    %46 = arith.negf %45 : vector<8x96xf32>
    %47 = math.exp %46 : vector<8x96xf32>
    %cst_23 = arith.constant 1.000000e+00 : f32
    %48 = vector.broadcast %cst_23 : f32 to vector<8x96xf32>
    %49 = arith.addf %48, %47 : vector<8x96xf32>
    %50 = arith.divf %48, %49 : vector<8x96xf32>
    %51 = vector.extract_strided_slice %44 {offsets = [0, 96], sizes = [8, 32], strides = [1, 1]} : vector<8x128xf32> to vector<8x32xf32>
    %52 = math.tanh %51 : vector<8x32xf32>
    %53 = vector.extract_strided_slice %50 {offsets = [0, 0], sizes = [8, 32], strides = [1, 1]} : vector<8x96xf32> to vector<8x32xf32>
    %54 = vector.extract_strided_slice %50 {offsets = [0, 32], sizes = [8, 32], strides = [1, 1]} : vector<8x96xf32> to vector<8x32xf32>
    %55 = vector.extract_strided_slice %50 {offsets = [0, 64], sizes = [8, 32], strides = [1, 1]} : vector<8x96xf32> to vector<8x32xf32>
    %56 = arith.mulf %54, %32 : vector<8x32xf32>
    %57 = arith.mulf %53, %52 : vector<8x32xf32>
    %58 = arith.addf %56, %57 : vector<8x32xf32>
    %59 = math.tanh %58 : vector<8x32xf32>
    %60 = arith.mulf %55, %59 : vector<8x32xf32>
    %61 = arith.index_cast %c1_i32 : i32 to index
    %c0_24 = arith.constant 0 : index
    %c0_25 = arith.constant 0 : index
    %62 = vector.load %arg5[%61, %c0_24, %c0_25] : memref<8x8x32xf32, #tpu.memory_space<vmem>>, vector<1x8x32xf32>
    %63 = vector.shape_cast %62 : vector<1x8x32xf32> to vector<8x32xf32>
    %64 = vector.shape_cast %60 : vector<8x32xf32> to vector<1x8x32xf32>
    tpu.vector_store %arg5[%61, %c0_24, %c0_25], %64 {strides = array<i32>} : memref<8x8x32xf32, #tpu.memory_space<vmem>>, vector<1x8x32xf32>,
    %c2_i32 = arith.constant 2 : i32
    %c8_i32_26 = arith.constant 8 : i32
    %65 = arith.muli %c2_i32, %c8_i32_26 : i32
    %66 = tpu.assume_multiple %65, 8 : i32
    %67 = arith.index_cast %66 : i32 to index
    %c0_27 = arith.constant 0 : index
    %68 = vector.load %arg6[%67, %c0_27] : memref<64x128xf32, #tpu.memory_space<vmem>>, vector<8x128xf32>
    %cst_28 = arith.constant dense<0.000000e+00> : vector<8x128xf32>
    %69 = tpu.matmul %60, %10, %cst_28 {dimension_numbers = #tpu.dot_dimension_numbers<[1], [0], [0], [1], [0, 0, 1, 1], [], []>} : vector<8x32xf32>, vector<32x128xf32>, vector<8x128xf32> -> vector<8x128xf32>
    %70 = arith.addf %68, %69 : vector<8x128xf32>
    %71 = vector.extract_strided_slice %70 {offsets = [0, 0], sizes = [8, 96], strides = [1, 1]} : vector<8x128xf32> to vector<8x96xf32>
    %72 = arith.negf %71 : vector<8x96xf32>
    %73 = math.exp %72 : vector<8x96xf32>
    %cst_29 = arith.constant 1.000000e+00 : f32
    %74 = vector.broadcast %cst_29 : f32 to vector<8x96xf32>
    %75 = arith.addf %74, %73 : vector<8x96xf32>
    %76 = arith.divf %74, %75 : vector<8x96xf32>
    %77 = vector.extract_strided_slice %70 {offsets = [0, 96], sizes = [8, 32], strides = [1, 1]} : vector<8x128xf32> to vector<8x32xf32>
    %78 = math.tanh %77 : vector<8x32xf32>
    %79 = vector.extract_strided_slice %76 {offsets = [0, 0], sizes = [8, 32], strides = [1, 1]} : vector<8x96xf32> to vector<8x32xf32>
    %80 = vector.extract_strided_slice %76 {offsets = [0, 32], sizes = [8, 32], strides = [1, 1]} : vector<8x96xf32> to vector<8x32xf32>
    %81 = vector.extract_strided_slice %76 {offsets = [0, 64], sizes = [8, 32], strides = [1, 1]} : vector<8x96xf32> to vector<8x32xf32>
    %82 = arith.mulf %80, %58 : vector<8x32xf32>
    %83 = arith.mulf %79, %78 : vector<8x32xf32>
    %84 = arith.addf %82, %83 : vector<8x32xf32>
    %85 = math.tanh %84 : vector<8x32xf32>
    %86 = arith.mulf %81, %85 : vector<8x32xf32>
    %87 = arith.index_cast %c2_i32 : i32 to index
    %c0_30 = arith.constant 0 : index
    %c0_31 = arith.constant 0 : index
    %88 = vector.load %arg5[%87, %c0_30, %c0_31] : memref<8x8x32xf32, #tpu.memory_space<vmem>>, vector<1x8x32xf32>
    %89 = vector.shape_cast %88 : vector<1x8x32xf32> to vector<8x32xf32>
    %90 = vector.shape_cast %86 : vector<8x32xf32> to vector<1x8x32xf32>
    tpu.vector_store %arg5[%87, %c0_30, %c0_31], %90 {strides = array<i32>} : memref<8x8x32xf32, #tpu.memory_space<vmem>>, vector<1x8x32xf32>,
    %c3_i32 = arith.constant 3 : i32
    %c8_i32_32 = arith.constant 8 : i32
    %91 = arith.muli %c3_i32, %c8_i32_32 : i32
    %92 = tpu.assume_multiple %91, 8 : i32
    %93 = arith.index_cast %92 : i32 to index
    %c0_33 = arith.constant 0 : index
    %94 = vector.load %arg6[%93, %c0_33] : memref<64x128xf32, #tpu.memory_space<vmem>>, vector<8x128xf32>
    %cst_34 = arith.constant dense<0.000000e+00> : vector<8x128xf32>
    %95 = tpu.matmul %86, %10, %cst_34 {dimension_numbers = #tpu.dot_dimension_numbers<[1], [0], [0], [1], [0, 0, 1, 1], [], []>} : vector<8x32xf32>, vector<32x128xf32>, vector<8x128xf32> -> vector<8x128xf32>
    %96 = arith.addf %94, %95 : vector<8x128xf32>
    %97 = vector.extract_strided_slice %96 {offsets = [0, 0], sizes = [8, 96], strides = [1, 1]} : vector<8x128xf32> to vector<8x96xf32>
    %98 = arith.negf %97 : vector<8x96xf32>
    %99 = math.exp %98 : vector<8x96xf32>
    %cst_35 = arith.constant 1.000000e+00 : f32
    %100 = vector.broadcast %cst_35 : f32 to vector<8x96xf32>
    %101 = arith.addf %100, %99 : vector<8x96xf32>
    %102 = arith.divf %100, %101 : vector<8x96xf32>
    %103 = vector.extract_strided_slice %96 {offsets = [0, 96], sizes = [8, 32], strides = [1, 1]} : vector<8x128xf32> to vector<8x32xf32>
    %104 = math.tanh %103 : vector<8x32xf32>
    %105 = vector.extract_strided_slice %102 {offsets = [0, 0], sizes = [8, 32], strides = [1, 1]} : vector<8x96xf32> to vector<8x32xf32>
    %106 = vector.extract_strided_slice %102 {offsets = [0, 32], sizes = [8, 32], strides = [1, 1]} : vector<8x96xf32> to vector<8x32xf32>
    %107 = vector.extract_strided_slice %102 {offsets = [0, 64], sizes = [8, 32], strides = [1, 1]} : vector<8x96xf32> to vector<8x32xf32>
    %108 = arith.mulf %106, %84 : vector<8x32xf32>
    %109 = arith.mulf %105, %104 : vector<8x32xf32>
    %110 = arith.addf %108, %109 : vector<8x32xf32>
    %111 = math.tanh %110 : vector<8x32xf32>
    %112 = arith.mulf %107, %111 : vector<8x32xf32>
    %113 = arith.index_cast %c3_i32 : i32 to index
    %c0_36 = arith.constant 0 : index
    %c0_37 = arith.constant 0 : index
    %114 = vector.load %arg5[%113, %c0_36, %c0_37] : memref<8x8x32xf32, #tpu.memory_space<vmem>>, vector<1x8x32xf32>
    %115 = vector.shape_cast %114 : vector<1x8x32xf32> to vector<8x32xf32>
    %116 = vector.shape_cast %112 : vector<8x32xf32> to vector<1x8x32xf32>
    tpu.vector_store %arg5[%113, %c0_36, %c0_37], %116 {strides = array<i32>} : memref<8x8x32xf32, #tpu.memory_space<vmem>>, vector<1x8x32xf32>,
    %c4_i32 = arith.constant 4 : i32
    %c8_i32_38 = arith.constant 8 : i32
    %117 = arith.muli %c4_i32, %c8_i32_38 : i32
    %118 = tpu.assume_multiple %117, 8 : i32
    %119 = arith.index_cast %118 : i32 to index
    %c0_39 = arith.constant 0 : index
    %120 = vector.load %arg6[%119, %c0_39] : memref<64x128xf32, #tpu.memory_space<vmem>>, vector<8x128xf32>
    %cst_40 = arith.constant dense<0.000000e+00> : vector<8x128xf32>
    %121 = tpu.matmul %112, %10, %cst_40 {dimension_numbers = #tpu.dot_dimension_numbers<[1], [0], [0], [1], [0, 0, 1, 1], [], []>} : vector<8x32xf32>, vector<32x128xf32>, vector<8x128xf32> -> vector<8x128xf32>
    %122 = arith.addf %120, %121 : vector<8x128xf32>
    %123 = vector.extract_strided_slice %122 {offsets = [0, 0], sizes = [8, 96], strides = [1, 1]} : vector<8x128xf32> to vector<8x96xf32>
    %124 = arith.negf %123 : vector<8x96xf32>
    %125 = math.exp %124 : vector<8x96xf32>
    %cst_41 = arith.constant 1.000000e+00 : f32
    %126 = vector.broadcast %cst_41 : f32 to vector<8x96xf32>
    %127 = arith.addf %126, %125 : vector<8x96xf32>
    %128 = arith.divf %126, %127 : vector<8x96xf32>
    %129 = vector.extract_strided_slice %122 {offsets = [0, 96], sizes = [8, 32], strides = [1, 1]} : vector<8x128xf32> to vector<8x32xf32>
    %130 = math.tanh %129 : vector<8x32xf32>
    %131 = vector.extract_strided_slice %128 {offsets = [0, 0], sizes = [8, 32], strides = [1, 1]} : vector<8x96xf32> to vector<8x32xf32>
    %132 = vector.extract_strided_slice %128 {offsets = [0, 32], sizes = [8, 32], strides = [1, 1]} : vector<8x96xf32> to vector<8x32xf32>
    %133 = vector.extract_strided_slice %128 {offsets = [0, 64], sizes = [8, 32], strides = [1, 1]} : vector<8x96xf32> to vector<8x32xf32>
    %134 = arith.mulf %132, %110 : vector<8x32xf32>
    %135 = arith.mulf %131, %130 : vector<8x32xf32>
    %136 = arith.addf %134, %135 : vector<8x32xf32>
    %137 = math.tanh %136 : vector<8x32xf32>
    %138 = arith.mulf %133, %137 : vector<8x32xf32>
    %139 = arith.index_cast %c4_i32 : i32 to index
    %c0_42 = arith.constant 0 : index
    %c0_43 = arith.constant 0 : index
    %140 = vector.load %arg5[%139, %c0_42, %c0_43] : memref<8x8x32xf32, #tpu.memory_space<vmem>>, vector<1x8x32xf32>
    %141 = vector.shape_cast %140 : vector<1x8x32xf32> to vector<8x32xf32>
    %142 = vector.shape_cast %138 : vector<8x32xf32> to vector<1x8x32xf32>
    tpu.vector_store %arg5[%139, %c0_42, %c0_43], %142 {strides = array<i32>} : memref<8x8x32xf32, #tpu.memory_space<vmem>>, vector<1x8x32xf32>,
    %c5_i32 = arith.constant 5 : i32
    %c8_i32_44 = arith.constant 8 : i32
    %143 = arith.muli %c5_i32, %c8_i32_44 : i32
    %144 = tpu.assume_multiple %143, 8 : i32
    %145 = arith.index_cast %144 : i32 to index
    %c0_45 = arith.constant 0 : index
    %146 = vector.load %arg6[%145, %c0_45] : memref<64x128xf32, #tpu.memory_space<vmem>>, vector<8x128xf32>
    %cst_46 = arith.constant dense<0.000000e+00> : vector<8x128xf32>
    %147 = tpu.matmul %138, %10, %cst_46 {dimension_numbers = #tpu.dot_dimension_numbers<[1], [0], [0], [1], [0, 0, 1, 1], [], []>} : vector<8x32xf32>, vector<32x128xf32>, vector<8x128xf32> -> vector<8x128xf32>
    %148 = arith.addf %146, %147 : vector<8x128xf32>
    %149 = vector.extract_strided_slice %148 {offsets = [0, 0], sizes = [8, 96], strides = [1, 1]} : vector<8x128xf32> to vector<8x96xf32>
    %150 = arith.negf %149 : vector<8x96xf32>
    %151 = math.exp %150 : vector<8x96xf32>
    %cst_47 = arith.constant 1.000000e+00 : f32
    %152 = vector.broadcast %cst_47 : f32 to vector<8x96xf32>
    %153 = arith.addf %152, %151 : vector<8x96xf32>
    %154 = arith.divf %152, %153 : vector<8x96xf32>
    %155 = vector.extract_strided_slice %148 {offsets = [0, 96], sizes = [8, 32], strides = [1, 1]} : vector<8x128xf32> to vector<8x32xf32>
    %156 = math.tanh %155 : vector<8x32xf32>
    %157 = vector.extract_strided_slice %154 {offsets = [0, 0], sizes = [8, 32], strides = [1, 1]} : vector<8x96xf32> to vector<8x32xf32>
    %158 = vector.extract_strided_slice %154 {offsets = [0, 32], sizes = [8, 32], strides = [1, 1]} : vector<8x96xf32> to vector<8x32xf32>
    %159 = vector.extract_strided_slice %154 {offsets = [0, 64], sizes = [8, 32], strides = [1, 1]} : vector<8x96xf32> to vector<8x32xf32>
    %160 = arith.mulf %158, %136 : vector<8x32xf32>
    %161 = arith.mulf %157, %156 : vector<8x32xf32>
    %162 = arith.addf %160, %161 : vector<8x32xf32>
    %163 = math.tanh %162 : vector<8x32xf32>
    %164 = arith.mulf %159, %163 : vector<8x32xf32>
    %165 = arith.index_cast %c5_i32 : i32 to index
    %c0_48 = arith.constant 0 : index
    %c0_49 = arith.constant 0 : index
    %166 = vector.load %arg5[%165, %c0_48, %c0_49] : memref<8x8x32xf32, #tpu.memory_space<vmem>>, vector<1x8x32xf32>
    %167 = vector.shape_cast %166 : vector<1x8x32xf32> to vector<8x32xf32>
    %168 = vector.shape_cast %164 : vector<8x32xf32> to vector<1x8x32xf32>
    tpu.vector_store %arg5[%165, %c0_48, %c0_49], %168 {strides = array<i32>} : memref<8x8x32xf32, #tpu.memory_space<vmem>>, vector<1x8x32xf32>,
    %c6_i32 = arith.constant 6 : i32
    %c8_i32_50 = arith.constant 8 : i32
    %169 = arith.muli %c6_i32, %c8_i32_50 : i32
    %170 = tpu.assume_multiple %169, 8 : i32
    %171 = arith.index_cast %170 : i32 to index
    %c0_51 = arith.constant 0 : index
    %172 = vector.load %arg6[%171, %c0_51] : memref<64x128xf32, #tpu.memory_space<vmem>>, vector<8x128xf32>
    %cst_52 = arith.constant dense<0.000000e+00> : vector<8x128xf32>
    %173 = tpu.matmul %164, %10, %cst_52 {dimension_numbers = #tpu.dot_dimension_numbers<[1], [0], [0], [1], [0, 0, 1, 1], [], []>} : vector<8x32xf32>, vector<32x128xf32>, vector<8x128xf32> -> vector<8x128xf32>
    %174 = arith.addf %172, %173 : vector<8x128xf32>
    %175 = vector.extract_strided_slice %174 {offsets = [0, 0], sizes = [8, 96], strides = [1, 1]} : vector<8x128xf32> to vector<8x96xf32>
    %176 = arith.negf %175 : vector<8x96xf32>
    %177 = math.exp %176 : vector<8x96xf32>
    %cst_53 = arith.constant 1.000000e+00 : f32
    %178 = vector.broadcast %cst_53 : f32 to vector<8x96xf32>
    %179 = arith.addf %178, %177 : vector<8x96xf32>
    %180 = arith.divf %178, %179 : vector<8x96xf32>
    %181 = vector.extract_strided_slice %174 {offsets = [0, 96], sizes = [8, 32], strides = [1, 1]} : vector<8x128xf32> to vector<8x32xf32>
    %182 = math.tanh %181 : vector<8x32xf32>
    %183 = vector.extract_strided_slice %180 {offsets = [0, 0], sizes = [8, 32], strides = [1, 1]} : vector<8x96xf32> to vector<8x32xf32>
    %184 = vector.extract_strided_slice %180 {offsets = [0, 32], sizes = [8, 32], strides = [1, 1]} : vector<8x96xf32> to vector<8x32xf32>
    %185 = vector.extract_strided_slice %180 {offsets = [0, 64], sizes = [8, 32], strides = [1, 1]} : vector<8x96xf32> to vector<8x32xf32>
    %186 = arith.mulf %184, %162 : vector<8x32xf32>
    %187 = arith.mulf %183, %182 : vector<8x32xf32>
    %188 = arith.addf %186, %187 : vector<8x32xf32>
    %189 = math.tanh %188 : vector<8x32xf32>
    %190 = arith.mulf %185, %189 : vector<8x32xf32>
    %191 = arith.index_cast %c6_i32 : i32 to index
    %c0_54 = arith.constant 0 : index
    %c0_55 = arith.constant 0 : index
    %192 = vector.load %arg5[%191, %c0_54, %c0_55] : memref<8x8x32xf32, #tpu.memory_space<vmem>>, vector<1x8x32xf32>
    %193 = vector.shape_cast %192 : vector<1x8x32xf32> to vector<8x32xf32>
    %194 = vector.shape_cast %190 : vector<8x32xf32> to vector<1x8x32xf32>
    tpu.vector_store %arg5[%191, %c0_54, %c0_55], %194 {strides = array<i32>} : memref<8x8x32xf32, #tpu.memory_space<vmem>>, vector<1x8x32xf32>,
    %c7_i32 = arith.constant 7 : i32
    %c8_i32_56 = arith.constant 8 : i32
    %195 = arith.muli %c7_i32, %c8_i32_56 : i32
    %196 = tpu.assume_multiple %195, 8 : i32
    %197 = arith.index_cast %196 : i32 to index
    %c0_57 = arith.constant 0 : index
    %198 = vector.load %arg6[%197, %c0_57] : memref<64x128xf32, #tpu.memory_space<vmem>>, vector<8x128xf32>
    %cst_58 = arith.constant dense<0.000000e+00> : vector<8x128xf32>
    %199 = tpu.matmul %190, %10, %cst_58 {dimension_numbers = #tpu.dot_dimension_numbers<[1], [0], [0], [1], [0, 0, 1, 1], [], []>} : vector<8x32xf32>, vector<32x128xf32>, vector<8x128xf32> -> vector<8x128xf32>
    %200 = arith.addf %198, %199 : vector<8x128xf32>
    %201 = vector.extract_strided_slice %200 {offsets = [0, 0], sizes = [8, 96], strides = [1, 1]} : vector<8x128xf32> to vector<8x96xf32>
    %202 = arith.negf %201 : vector<8x96xf32>
    %203 = math.exp %202 : vector<8x96xf32>
    %cst_59 = arith.constant 1.000000e+00 : f32
    %204 = vector.broadcast %cst_59 : f32 to vector<8x96xf32>
    %205 = arith.addf %204, %203 : vector<8x96xf32>
    %206 = arith.divf %204, %205 : vector<8x96xf32>
    %207 = vector.extract_strided_slice %200 {offsets = [0, 96], sizes = [8, 32], strides = [1, 1]} : vector<8x128xf32> to vector<8x32xf32>
    %208 = math.tanh %207 : vector<8x32xf32>
    %209 = vector.extract_strided_slice %206 {offsets = [0, 0], sizes = [8, 32], strides = [1, 1]} : vector<8x96xf32> to vector<8x32xf32>
    %210 = vector.extract_strided_slice %206 {offsets = [0, 32], sizes = [8, 32], strides = [1, 1]} : vector<8x96xf32> to vector<8x32xf32>
    %211 = vector.extract_strided_slice %206 {offsets = [0, 64], sizes = [8, 32], strides = [1, 1]} : vector<8x96xf32> to vector<8x32xf32>
    %212 = arith.mulf %210, %188 : vector<8x32xf32>
    %213 = arith.mulf %209, %208 : vector<8x32xf32>
    %214 = arith.addf %212, %213 : vector<8x32xf32>
    %215 = math.tanh %214 : vector<8x32xf32>
    %216 = arith.mulf %211, %215 : vector<8x32xf32>
    %217 = arith.index_cast %c7_i32 : i32 to index
    %c0_60 = arith.constant 0 : index
    %c0_61 = arith.constant 0 : index
    %218 = vector.load %arg5[%217, %c0_60, %c0_61] : memref<8x8x32xf32, #tpu.memory_space<vmem>>, vector<1x8x32xf32>
    %219 = vector.shape_cast %218 : vector<1x8x32xf32> to vector<8x32xf32>
    %220 = vector.shape_cast %216 : vector<8x32xf32> to vector<1x8x32xf32>
    tpu.vector_store %arg5[%217, %c0_60, %c0_61], %220 {strides = array<i32>} : memref<8x8x32xf32, #tpu.memory_space<vmem>>, vector<1x8x32xf32>,
    %c8_i32_62 = arith.constant 8 : i32
    %c0_63 = arith.constant 0 : index
    %c0_64 = arith.constant 0 : index
    %221 = vector.load %arg7[%c0_63, %c0_64] : memref<8x32xf32, #tpu.memory_space<vmem>>, vector<8x32xf32>
    tpu.vector_store %arg7[%c0_63, %c0_64], %216 {strides = array<i32>} : memref<8x32xf32, #tpu.memory_space<vmem>>, vector<8x32xf32>,
    %c0_65 = arith.constant 0 : index
    %c0_66 = arith.constant 0 : index
    %222 = vector.load %arg8[%c0_65, %c0_66] : memref<8x32xf32, #tpu.memory_space<vmem>>, vector<8x32xf32>
    tpu.vector_store %arg8[%c0_65, %c0_66], %214 {strides = array<i32>} : memref<8x32xf32, #tpu.memory_space<vmem>>, vector<8x32xf32>,
    return
  }
  func.func @transform_0(%arg0: i32) -> (i32, i32) {
    %c0_i32 = arith.constant 0 : i32
    %c0_i32_0 = arith.constant 0 : i32
    return %arg0, %c0_i32 : i32, i32
  }
  func.func @transform_1(%arg0: i32) -> (i32, i32) {
    %c0_i32 = arith.constant 0 : i32
    %c0_i32_0 = arith.constant 0 : i32
    %c0_i32_1 = arith.constant 0 : i32
    return %c0_i32, %c0_i32_0 : i32, i32
  }
  func.func @transform_2(%arg0: i32) -> (i32, i32) {
    %c0_i32 = arith.constant 0 : i32
    %c0_i32_0 = arith.constant 0 : i32
    %c0_i32_1 = arith.constant 0 : i32
    return %c0_i32, %c0_i32_0 : i32, i32
  }
  func.func @transform_3(%arg0: i32) -> (i32, i32) {
    %c0_i32 = arith.constant 0 : i32
    %c0_i32_0 = arith.constant 0 : i32
    %c0_i32_1 = arith.constant 0 : i32
    return %c0_i32, %c0_i32_0 : i32, i32
  }
  func.func @transform_4(%arg0: i32) -> (i32, i32, i32) {
    %c0_i32 = arith.constant 0 : i32
    %c0_i32_0 = arith.constant 0 : i32
    %c0_i32_1 = arith.constant 0 : i32
    return %arg0, %c0_i32, %c0_i32_0 : i32, i32, i32
  }
}

module attributes {stable_mosaic.version = 11 : i64} {
  func.func @_lstm_last_fc_kernel(%arg0: i32, %arg1: memref<64x32xf32, #tpu.memory_space<vmem>>, %arg2: memref<32x128xf32, #tpu.memory_space<vmem>>, %arg3: memref<1x128xf32, #tpu.memory_space<vmem>>, %arg4: memref<32x128xf32, #tpu.memory_space<vmem>>, %arg5: memref<32x4xf32, #tpu.memory_space<vmem>>, %arg6: memref<1x4xf32, #tpu.memory_space<vmem>>, %arg7: memref<8x4xf32, #tpu.memory_space<vmem>>, %arg8: memref<64x128xf32, #tpu.memory_space<vmem>>, %arg9: memref<8x32xf32, #tpu.memory_space<vmem>>, %arg10: memref<8x32xf32, #tpu.memory_space<vmem>>) attributes {dimension_semantics = [#tpu.dimension_semantics<arbitrary>], iteration_bounds = array<i64: 1>, scalar_prefetch = 0 : i64, scratch_operands = 3 : i64, tpu.core_type = #tpu.core_type<tc>, window_params = [{transform_indices = @transform_0, window_bounds = array<i64: 64, 32>}, {pipeline_mode = #tpu.pipeline_mode<synchronous>, transform_indices = @transform_1, window_bounds = array<i64: 32, 128>}, {pipeline_mode = #tpu.pipeline_mode<synchronous>, transform_indices = @transform_2, window_bounds = array<i64: 1, 128>}, {pipeline_mode = #tpu.pipeline_mode<synchronous>, transform_indices = @transform_3, window_bounds = array<i64: 32, 128>}, {pipeline_mode = #tpu.pipeline_mode<synchronous>, transform_indices = @transform_4, window_bounds = array<i64: 32, 4>}, {pipeline_mode = #tpu.pipeline_mode<synchronous>, transform_indices = @transform_5, window_bounds = array<i64: 1, 4>}, {pipeline_mode = #tpu.pipeline_mode<synchronous>, transform_indices = @transform_6, window_bounds = array<i64: 8, 4>}]} {
    %c0_i32 = arith.constant 0 : i32
    %0 = arith.cmpi eq, %arg0, %c0_i32 : i32
    %1 = arith.extui %0 : i1 to i32
    %c0_i32_0 = arith.constant 0 : i32
    %2 = arith.cmpi ne, %1, %c0_i32_0 : i32
    scf.if %2 {
      %cst_53 = arith.constant 0.000000e+00 : f32
      %194 = vector.broadcast %cst_53 : f32 to vector<8x32xf32>
      %c0_54 = arith.constant 0 : index
      %c0_55 = arith.constant 0 : index
      %195 = vector.load %arg9[%c0_54, %c0_55] : memref<8x32xf32, #tpu.memory_space<vmem>>, vector<8x32xf32>
      tpu.vector_store %arg9[%c0_54, %c0_55], %194 {strides = array<i32>} : memref<8x32xf32, #tpu.memory_space<vmem>>, vector<8x32xf32>,
      %cst_56 = arith.constant 0.000000e+00 : f32
      %196 = vector.broadcast %cst_56 : f32 to vector<8x32xf32>
      %c0_57 = arith.constant 0 : index
      %c0_58 = arith.constant 0 : index
      %197 = vector.load %arg10[%c0_57, %c0_58] : memref<8x32xf32, #tpu.memory_space<vmem>>, vector<8x32xf32>
      tpu.vector_store %arg10[%c0_57, %c0_58], %196 {strides = array<i32>} : memref<8x32xf32, #tpu.memory_space<vmem>>, vector<8x32xf32>,
    } else {
    }
    %c0 = arith.constant 0 : index
    %c0_1 = arith.constant 0 : index
    %3 = vector.load %arg1[%c0, %c0_1] : memref<64x32xf32, #tpu.memory_space<vmem>>, vector<64x32xf32>
    %c0_2 = arith.constant 0 : index
    %c0_3 = arith.constant 0 : index
    %4 = vector.load %arg2[%c0_2, %c0_3] : memref<32x128xf32, #tpu.memory_space<vmem>>, vector<32x128xf32>
    %cst = arith.constant dense<0.000000e+00> : vector<64x128xf32>
    %5 = tpu.matmul %3, %4, %cst {dimension_numbers = #tpu.dot_dimension_numbers<[1], [0], [0], [1], [0, 0, 1, 1], [], []>} : vector<64x32xf32>, vector<32x128xf32>, vector<64x128xf32> -> vector<64x128xf32>
    %c0_4 = arith.constant 0 : index
    %c0_5 = arith.constant 0 : index
    %6 = vector.load %arg3[%c0_4, %c0_5] : memref<1x128xf32, #tpu.memory_space<vmem>>, vector<1x128xf32>
    %7 = vector.broadcast %6 : vector<1x128xf32> to vector<64x128xf32>
    %8 = arith.addf %5, %7 : vector<64x128xf32>
    %c0_6 = arith.constant 0 : index
    %c0_7 = arith.constant 0 : index
    %9 = vector.load %arg8[%c0_6, %c0_7] : memref<64x128xf32, #tpu.memory_space<vmem>>, vector<64x128xf32>
    tpu.vector_store %arg8[%c0_6, %c0_7], %8 {strides = array<i32>} : memref<64x128xf32, #tpu.memory_space<vmem>>, vector<64x128xf32>,
    %c0_8 = arith.constant 0 : index
    %c0_9 = arith.constant 0 : index
    %10 = vector.load %arg4[%c0_8, %c0_9] : memref<32x128xf32, #tpu.memory_space<vmem>>, vector<32x128xf32>
    %c0_10 = arith.constant 0 : index
    %c0_11 = arith.constant 0 : index
    %11 = vector.load %arg9[%c0_10, %c0_11] : memref<8x32xf32, #tpu.memory_space<vmem>>, vector<8x32xf32>
    %c0_12 = arith.constant 0 : index
    %c0_13 = arith.constant 0 : index
    %12 = vector.load %arg10[%c0_12, %c0_13] : memref<8x32xf32, #tpu.memory_space<vmem>>, vector<8x32xf32>
    %c0_i32_14 = arith.constant 0 : i32
    %c8_i32 = arith.constant 8 : i32
    %13 = arith.muli %c0_i32_14, %c8_i32 : i32
    %14 = tpu.assume_multiple %13, 8 : i32
    %15 = arith.index_cast %14 : i32 to index
    %c0_15 = arith.constant 0 : index
    %16 = vector.load %arg8[%15, %c0_15] : memref<64x128xf32, #tpu.memory_space<vmem>>, vector<8x128xf32>
    %cst_16 = arith.constant dense<0.000000e+00> : vector<8x128xf32>
    %17 = tpu.matmul %11, %10, %cst_16 {dimension_numbers = #tpu.dot_dimension_numbers<[1], [0], [0], [1], [0, 0, 1, 1], [], []>} : vector<8x32xf32>, vector<32x128xf32>, vector<8x128xf32> -> vector<8x128xf32>
    %18 = arith.addf %16, %17 : vector<8x128xf32>
    %19 = vector.extract_strided_slice %18 {offsets = [0, 0], sizes = [8, 96], strides = [1, 1]} : vector<8x128xf32> to vector<8x96xf32>
    %20 = arith.negf %19 : vector<8x96xf32>
    %21 = math.exp %20 : vector<8x96xf32>
    %cst_17 = arith.constant 1.000000e+00 : f32
    %22 = vector.broadcast %cst_17 : f32 to vector<8x96xf32>
    %23 = arith.addf %22, %21 : vector<8x96xf32>
    %24 = arith.divf %22, %23 : vector<8x96xf32>
    %25 = vector.extract_strided_slice %18 {offsets = [0, 96], sizes = [8, 32], strides = [1, 1]} : vector<8x128xf32> to vector<8x32xf32>
    %26 = math.tanh %25 : vector<8x32xf32>
    %27 = vector.extract_strided_slice %24 {offsets = [0, 0], sizes = [8, 32], strides = [1, 1]} : vector<8x96xf32> to vector<8x32xf32>
    %28 = vector.extract_strided_slice %24 {offsets = [0, 32], sizes = [8, 32], strides = [1, 1]} : vector<8x96xf32> to vector<8x32xf32>
    %29 = vector.extract_strided_slice %24 {offsets = [0, 64], sizes = [8, 32], strides = [1, 1]} : vector<8x96xf32> to vector<8x32xf32>
    %30 = arith.mulf %28, %12 : vector<8x32xf32>
    %31 = arith.mulf %27, %26 : vector<8x32xf32>
    %32 = arith.addf %30, %31 : vector<8x32xf32>
    %33 = math.tanh %32 : vector<8x32xf32>
    %34 = arith.mulf %29, %33 : vector<8x32xf32>
    %c1_i32 = arith.constant 1 : i32
    %c8_i32_18 = arith.constant 8 : i32
    %35 = arith.muli %c1_i32, %c8_i32_18 : i32
    %36 = tpu.assume_multiple %35, 8 : i32
    %37 = arith.index_cast %36 : i32 to index
    %c0_19 = arith.constant 0 : index
    %38 = vector.load %arg8[%37, %c0_19] : memref<64x128xf32, #tpu.memory_space<vmem>>, vector<8x128xf32>
    %cst_20 = arith.constant dense<0.000000e+00> : vector<8x128xf32>
    %39 = tpu.matmul %34, %10, %cst_20 {dimension_numbers = #tpu.dot_dimension_numbers<[1], [0], [0], [1], [0, 0, 1, 1], [], []>} : vector<8x32xf32>, vector<32x128xf32>, vector<8x128xf32> -> vector<8x128xf32>
    %40 = arith.addf %38, %39 : vector<8x128xf32>
    %41 = vector.extract_strided_slice %40 {offsets = [0, 0], sizes = [8, 96], strides = [1, 1]} : vector<8x128xf32> to vector<8x96xf32>
    %42 = arith.negf %41 : vector<8x96xf32>
    %43 = math.exp %42 : vector<8x96xf32>
    %cst_21 = arith.constant 1.000000e+00 : f32
    %44 = vector.broadcast %cst_21 : f32 to vector<8x96xf32>
    %45 = arith.addf %44, %43 : vector<8x96xf32>
    %46 = arith.divf %44, %45 : vector<8x96xf32>
    %47 = vector.extract_strided_slice %40 {offsets = [0, 96], sizes = [8, 32], strides = [1, 1]} : vector<8x128xf32> to vector<8x32xf32>
    %48 = math.tanh %47 : vector<8x32xf32>
    %49 = vector.extract_strided_slice %46 {offsets = [0, 0], sizes = [8, 32], strides = [1, 1]} : vector<8x96xf32> to vector<8x32xf32>
    %50 = vector.extract_strided_slice %46 {offsets = [0, 32], sizes = [8, 32], strides = [1, 1]} : vector<8x96xf32> to vector<8x32xf32>
    %51 = vector.extract_strided_slice %46 {offsets = [0, 64], sizes = [8, 32], strides = [1, 1]} : vector<8x96xf32> to vector<8x32xf32>
    %52 = arith.mulf %50, %32 : vector<8x32xf32>
    %53 = arith.mulf %49, %48 : vector<8x32xf32>
    %54 = arith.addf %52, %53 : vector<8x32xf32>
    %55 = math.tanh %54 : vector<8x32xf32>
    %56 = arith.mulf %51, %55 : vector<8x32xf32>
    %c2_i32 = arith.constant 2 : i32
    %c8_i32_22 = arith.constant 8 : i32
    %57 = arith.muli %c2_i32, %c8_i32_22 : i32
    %58 = tpu.assume_multiple %57, 8 : i32
    %59 = arith.index_cast %58 : i32 to index
    %c0_23 = arith.constant 0 : index
    %60 = vector.load %arg8[%59, %c0_23] : memref<64x128xf32, #tpu.memory_space<vmem>>, vector<8x128xf32>
    %cst_24 = arith.constant dense<0.000000e+00> : vector<8x128xf32>
    %61 = tpu.matmul %56, %10, %cst_24 {dimension_numbers = #tpu.dot_dimension_numbers<[1], [0], [0], [1], [0, 0, 1, 1], [], []>} : vector<8x32xf32>, vector<32x128xf32>, vector<8x128xf32> -> vector<8x128xf32>
    %62 = arith.addf %60, %61 : vector<8x128xf32>
    %63 = vector.extract_strided_slice %62 {offsets = [0, 0], sizes = [8, 96], strides = [1, 1]} : vector<8x128xf32> to vector<8x96xf32>
    %64 = arith.negf %63 : vector<8x96xf32>
    %65 = math.exp %64 : vector<8x96xf32>
    %cst_25 = arith.constant 1.000000e+00 : f32
    %66 = vector.broadcast %cst_25 : f32 to vector<8x96xf32>
    %67 = arith.addf %66, %65 : vector<8x96xf32>
    %68 = arith.divf %66, %67 : vector<8x96xf32>
    %69 = vector.extract_strided_slice %62 {offsets = [0, 96], sizes = [8, 32], strides = [1, 1]} : vector<8x128xf32> to vector<8x32xf32>
    %70 = math.tanh %69 : vector<8x32xf32>
    %71 = vector.extract_strided_slice %68 {offsets = [0, 0], sizes = [8, 32], strides = [1, 1]} : vector<8x96xf32> to vector<8x32xf32>
    %72 = vector.extract_strided_slice %68 {offsets = [0, 32], sizes = [8, 32], strides = [1, 1]} : vector<8x96xf32> to vector<8x32xf32>
    %73 = vector.extract_strided_slice %68 {offsets = [0, 64], sizes = [8, 32], strides = [1, 1]} : vector<8x96xf32> to vector<8x32xf32>
    %74 = arith.mulf %72, %54 : vector<8x32xf32>
    %75 = arith.mulf %71, %70 : vector<8x32xf32>
    %76 = arith.addf %74, %75 : vector<8x32xf32>
    %77 = math.tanh %76 : vector<8x32xf32>
    %78 = arith.mulf %73, %77 : vector<8x32xf32>
    %c3_i32 = arith.constant 3 : i32
    %c8_i32_26 = arith.constant 8 : i32
    %79 = arith.muli %c3_i32, %c8_i32_26 : i32
    %80 = tpu.assume_multiple %79, 8 : i32
    %81 = arith.index_cast %80 : i32 to index
    %c0_27 = arith.constant 0 : index
    %82 = vector.load %arg8[%81, %c0_27] : memref<64x128xf32, #tpu.memory_space<vmem>>, vector<8x128xf32>
    %cst_28 = arith.constant dense<0.000000e+00> : vector<8x128xf32>
    %83 = tpu.matmul %78, %10, %cst_28 {dimension_numbers = #tpu.dot_dimension_numbers<[1], [0], [0], [1], [0, 0, 1, 1], [], []>} : vector<8x32xf32>, vector<32x128xf32>, vector<8x128xf32> -> vector<8x128xf32>
    %84 = arith.addf %82, %83 : vector<8x128xf32>
    %85 = vector.extract_strided_slice %84 {offsets = [0, 0], sizes = [8, 96], strides = [1, 1]} : vector<8x128xf32> to vector<8x96xf32>
    %86 = arith.negf %85 : vector<8x96xf32>
    %87 = math.exp %86 : vector<8x96xf32>
    %cst_29 = arith.constant 1.000000e+00 : f32
    %88 = vector.broadcast %cst_29 : f32 to vector<8x96xf32>
    %89 = arith.addf %88, %87 : vector<8x96xf32>
    %90 = arith.divf %88, %89 : vector<8x96xf32>
    %91 = vector.extract_strided_slice %84 {offsets = [0, 96], sizes = [8, 32], strides = [1, 1]} : vector<8x128xf32> to vector<8x32xf32>
    %92 = math.tanh %91 : vector<8x32xf32>
    %93 = vector.extract_strided_slice %90 {offsets = [0, 0], sizes = [8, 32], strides = [1, 1]} : vector<8x96xf32> to vector<8x32xf32>
    %94 = vector.extract_strided_slice %90 {offsets = [0, 32], sizes = [8, 32], strides = [1, 1]} : vector<8x96xf32> to vector<8x32xf32>
    %95 = vector.extract_strided_slice %90 {offsets = [0, 64], sizes = [8, 32], strides = [1, 1]} : vector<8x96xf32> to vector<8x32xf32>
    %96 = arith.mulf %94, %76 : vector<8x32xf32>
    %97 = arith.mulf %93, %92 : vector<8x32xf32>
    %98 = arith.addf %96, %97 : vector<8x32xf32>
    %99 = math.tanh %98 : vector<8x32xf32>
    %100 = arith.mulf %95, %99 : vector<8x32xf32>
    %c4_i32 = arith.constant 4 : i32
    %c8_i32_30 = arith.constant 8 : i32
    %101 = arith.muli %c4_i32, %c8_i32_30 : i32
    %102 = tpu.assume_multiple %101, 8 : i32
    %103 = arith.index_cast %102 : i32 to index
    %c0_31 = arith.constant 0 : index
    %104 = vector.load %arg8[%103, %c0_31] : memref<64x128xf32, #tpu.memory_space<vmem>>, vector<8x128xf32>
    %cst_32 = arith.constant dense<0.000000e+00> : vector<8x128xf32>
    %105 = tpu.matmul %100, %10, %cst_32 {dimension_numbers = #tpu.dot_dimension_numbers<[1], [0], [0], [1], [0, 0, 1, 1], [], []>} : vector<8x32xf32>, vector<32x128xf32>, vector<8x128xf32> -> vector<8x128xf32>
    %106 = arith.addf %104, %105 : vector<8x128xf32>
    %107 = vector.extract_strided_slice %106 {offsets = [0, 0], sizes = [8, 96], strides = [1, 1]} : vector<8x128xf32> to vector<8x96xf32>
    %108 = arith.negf %107 : vector<8x96xf32>
    %109 = math.exp %108 : vector<8x96xf32>
    %cst_33 = arith.constant 1.000000e+00 : f32
    %110 = vector.broadcast %cst_33 : f32 to vector<8x96xf32>
    %111 = arith.addf %110, %109 : vector<8x96xf32>
    %112 = arith.divf %110, %111 : vector<8x96xf32>
    %113 = vector.extract_strided_slice %106 {offsets = [0, 96], sizes = [8, 32], strides = [1, 1]} : vector<8x128xf32> to vector<8x32xf32>
    %114 = math.tanh %113 : vector<8x32xf32>
    %115 = vector.extract_strided_slice %112 {offsets = [0, 0], sizes = [8, 32], strides = [1, 1]} : vector<8x96xf32> to vector<8x32xf32>
    %116 = vector.extract_strided_slice %112 {offsets = [0, 32], sizes = [8, 32], strides = [1, 1]} : vector<8x96xf32> to vector<8x32xf32>
    %117 = vector.extract_strided_slice %112 {offsets = [0, 64], sizes = [8, 32], strides = [1, 1]} : vector<8x96xf32> to vector<8x32xf32>
    %118 = arith.mulf %116, %98 : vector<8x32xf32>
    %119 = arith.mulf %115, %114 : vector<8x32xf32>
    %120 = arith.addf %118, %119 : vector<8x32xf32>
    %121 = math.tanh %120 : vector<8x32xf32>
    %122 = arith.mulf %117, %121 : vector<8x32xf32>
    %c5_i32 = arith.constant 5 : i32
    %c8_i32_34 = arith.constant 8 : i32
    %123 = arith.muli %c5_i32, %c8_i32_34 : i32
    %124 = tpu.assume_multiple %123, 8 : i32
    %125 = arith.index_cast %124 : i32 to index
    %c0_35 = arith.constant 0 : index
    %126 = vector.load %arg8[%125, %c0_35] : memref<64x128xf32, #tpu.memory_space<vmem>>, vector<8x128xf32>
    %cst_36 = arith.constant dense<0.000000e+00> : vector<8x128xf32>
    %127 = tpu.matmul %122, %10, %cst_36 {dimension_numbers = #tpu.dot_dimension_numbers<[1], [0], [0], [1], [0, 0, 1, 1], [], []>} : vector<8x32xf32>, vector<32x128xf32>, vector<8x128xf32> -> vector<8x128xf32>
    %128 = arith.addf %126, %127 : vector<8x128xf32>
    %129 = vector.extract_strided_slice %128 {offsets = [0, 0], sizes = [8, 96], strides = [1, 1]} : vector<8x128xf32> to vector<8x96xf32>
    %130 = arith.negf %129 : vector<8x96xf32>
    %131 = math.exp %130 : vector<8x96xf32>
    %cst_37 = arith.constant 1.000000e+00 : f32
    %132 = vector.broadcast %cst_37 : f32 to vector<8x96xf32>
    %133 = arith.addf %132, %131 : vector<8x96xf32>
    %134 = arith.divf %132, %133 : vector<8x96xf32>
    %135 = vector.extract_strided_slice %128 {offsets = [0, 96], sizes = [8, 32], strides = [1, 1]} : vector<8x128xf32> to vector<8x32xf32>
    %136 = math.tanh %135 : vector<8x32xf32>
    %137 = vector.extract_strided_slice %134 {offsets = [0, 0], sizes = [8, 32], strides = [1, 1]} : vector<8x96xf32> to vector<8x32xf32>
    %138 = vector.extract_strided_slice %134 {offsets = [0, 32], sizes = [8, 32], strides = [1, 1]} : vector<8x96xf32> to vector<8x32xf32>
    %139 = vector.extract_strided_slice %134 {offsets = [0, 64], sizes = [8, 32], strides = [1, 1]} : vector<8x96xf32> to vector<8x32xf32>
    %140 = arith.mulf %138, %120 : vector<8x32xf32>
    %141 = arith.mulf %137, %136 : vector<8x32xf32>
    %142 = arith.addf %140, %141 : vector<8x32xf32>
    %143 = math.tanh %142 : vector<8x32xf32>
    %144 = arith.mulf %139, %143 : vector<8x32xf32>
    %c6_i32 = arith.constant 6 : i32
    %c8_i32_38 = arith.constant 8 : i32
    %145 = arith.muli %c6_i32, %c8_i32_38 : i32
    %146 = tpu.assume_multiple %145, 8 : i32
    %147 = arith.index_cast %146 : i32 to index
    %c0_39 = arith.constant 0 : index
    %148 = vector.load %arg8[%147, %c0_39] : memref<64x128xf32, #tpu.memory_space<vmem>>, vector<8x128xf32>
    %cst_40 = arith.constant dense<0.000000e+00> : vector<8x128xf32>
    %149 = tpu.matmul %144, %10, %cst_40 {dimension_numbers = #tpu.dot_dimension_numbers<[1], [0], [0], [1], [0, 0, 1, 1], [], []>} : vector<8x32xf32>, vector<32x128xf32>, vector<8x128xf32> -> vector<8x128xf32>
    %150 = arith.addf %148, %149 : vector<8x128xf32>
    %151 = vector.extract_strided_slice %150 {offsets = [0, 0], sizes = [8, 96], strides = [1, 1]} : vector<8x128xf32> to vector<8x96xf32>
    %152 = arith.negf %151 : vector<8x96xf32>
    %153 = math.exp %152 : vector<8x96xf32>
    %cst_41 = arith.constant 1.000000e+00 : f32
    %154 = vector.broadcast %cst_41 : f32 to vector<8x96xf32>
    %155 = arith.addf %154, %153 : vector<8x96xf32>
    %156 = arith.divf %154, %155 : vector<8x96xf32>
    %157 = vector.extract_strided_slice %150 {offsets = [0, 96], sizes = [8, 32], strides = [1, 1]} : vector<8x128xf32> to vector<8x32xf32>
    %158 = math.tanh %157 : vector<8x32xf32>
    %159 = vector.extract_strided_slice %156 {offsets = [0, 0], sizes = [8, 32], strides = [1, 1]} : vector<8x96xf32> to vector<8x32xf32>
    %160 = vector.extract_strided_slice %156 {offsets = [0, 32], sizes = [8, 32], strides = [1, 1]} : vector<8x96xf32> to vector<8x32xf32>
    %161 = vector.extract_strided_slice %156 {offsets = [0, 64], sizes = [8, 32], strides = [1, 1]} : vector<8x96xf32> to vector<8x32xf32>
    %162 = arith.mulf %160, %142 : vector<8x32xf32>
    %163 = arith.mulf %159, %158 : vector<8x32xf32>
    %164 = arith.addf %162, %163 : vector<8x32xf32>
    %165 = math.tanh %164 : vector<8x32xf32>
    %166 = arith.mulf %161, %165 : vector<8x32xf32>
    %c7_i32 = arith.constant 7 : i32
    %c8_i32_42 = arith.constant 8 : i32
    %167 = arith.muli %c7_i32, %c8_i32_42 : i32
    %168 = tpu.assume_multiple %167, 8 : i32
    %169 = arith.index_cast %168 : i32 to index
    %c0_43 = arith.constant 0 : index
    %170 = vector.load %arg8[%169, %c0_43] : memref<64x128xf32, #tpu.memory_space<vmem>>, vector<8x128xf32>
    %cst_44 = arith.constant dense<0.000000e+00> : vector<8x128xf32>
    %171 = tpu.matmul %166, %10, %cst_44 {dimension_numbers = #tpu.dot_dimension_numbers<[1], [0], [0], [1], [0, 0, 1, 1], [], []>} : vector<8x32xf32>, vector<32x128xf32>, vector<8x128xf32> -> vector<8x128xf32>
    %172 = arith.addf %170, %171 : vector<8x128xf32>
    %173 = vector.extract_strided_slice %172 {offsets = [0, 0], sizes = [8, 96], strides = [1, 1]} : vector<8x128xf32> to vector<8x96xf32>
    %174 = arith.negf %173 : vector<8x96xf32>
    %175 = math.exp %174 : vector<8x96xf32>
    %cst_45 = arith.constant 1.000000e+00 : f32
    %176 = vector.broadcast %cst_45 : f32 to vector<8x96xf32>
    %177 = arith.addf %176, %175 : vector<8x96xf32>
    %178 = arith.divf %176, %177 : vector<8x96xf32>
    %179 = vector.extract_strided_slice %172 {offsets = [0, 96], sizes = [8, 32], strides = [1, 1]} : vector<8x128xf32> to vector<8x32xf32>
    %180 = math.tanh %179 : vector<8x32xf32>
    %181 = vector.extract_strided_slice %178 {offsets = [0, 0], sizes = [8, 32], strides = [1, 1]} : vector<8x96xf32> to vector<8x32xf32>
    %182 = vector.extract_strided_slice %178 {offsets = [0, 32], sizes = [8, 32], strides = [1, 1]} : vector<8x96xf32> to vector<8x32xf32>
    %183 = vector.extract_strided_slice %178 {offsets = [0, 64], sizes = [8, 32], strides = [1, 1]} : vector<8x96xf32> to vector<8x32xf32>
    %184 = arith.mulf %182, %164 : vector<8x32xf32>
    %185 = arith.mulf %181, %180 : vector<8x32xf32>
    %186 = arith.addf %184, %185 : vector<8x32xf32>
    %187 = math.tanh %186 : vector<8x32xf32>
    %188 = arith.mulf %183, %187 : vector<8x32xf32>
    %c8_i32_46 = arith.constant 8 : i32
    %c0_47 = arith.constant 0 : index
    %c0_48 = arith.constant 0 : index
    %189 = vector.load %arg9[%c0_47, %c0_48] : memref<8x32xf32, #tpu.memory_space<vmem>>, vector<8x32xf32>
    tpu.vector_store %arg9[%c0_47, %c0_48], %188 {strides = array<i32>} : memref<8x32xf32, #tpu.memory_space<vmem>>, vector<8x32xf32>,
    %c0_49 = arith.constant 0 : index
    %c0_50 = arith.constant 0 : index
    %190 = vector.load %arg10[%c0_49, %c0_50] : memref<8x32xf32, #tpu.memory_space<vmem>>, vector<8x32xf32>
    tpu.vector_store %arg10[%c0_49, %c0_50], %186 {strides = array<i32>} : memref<8x32xf32, #tpu.memory_space<vmem>>, vector<8x32xf32>,
    %c0_i32_51 = arith.constant 0 : i32
    %191 = arith.cmpi eq, %arg0, %c0_i32_51 : i32
    %192 = arith.extui %191 : i1 to i32
    %c0_i32_52 = arith.constant 0 : i32
    %193 = arith.cmpi ne, %192, %c0_i32_52 : i32
    scf.if %193 {
      %c0_53 = arith.constant 0 : index
      %c0_54 = arith.constant 0 : index
      %194 = vector.load %arg5[%c0_53, %c0_54] : memref<32x4xf32, #tpu.memory_space<vmem>>, vector<32x4xf32>
      %cst_55 = arith.constant dense<0.000000e+00> : vector<8x4xf32>
      %195 = tpu.matmul %188, %194, %cst_55 {dimension_numbers = #tpu.dot_dimension_numbers<[1], [0], [0], [1], [0, 0, 1, 1], [], []>} : vector<8x32xf32>, vector<32x4xf32>, vector<8x4xf32> -> vector<8x4xf32>
      %c0_56 = arith.constant 0 : index
      %c0_57 = arith.constant 0 : index
      %196 = vector.load %arg6[%c0_56, %c0_57] : memref<1x4xf32, #tpu.memory_space<vmem>>, vector<1x4xf32>
      %197 = vector.broadcast %196 : vector<1x4xf32> to vector<8x4xf32>
      %198 = arith.addf %195, %197 : vector<8x4xf32>
      %c0_58 = arith.constant 0 : index
      %c0_59 = arith.constant 0 : index
      %199 = vector.load %arg7[%c0_58, %c0_59] : memref<8x4xf32, #tpu.memory_space<vmem>>, vector<8x4xf32>
      tpu.vector_store %arg7[%c0_58, %c0_59], %198 {strides = array<i32>} : memref<8x4xf32, #tpu.memory_space<vmem>>, vector<8x4xf32>,
    } else {
    }
    return
  }
  func.func @transform_0(%arg0: i32) -> (i32, i32) {
    %c0_i32 = arith.constant 0 : i32
    %c0_i32_0 = arith.constant 0 : i32
    return %arg0, %c0_i32 : i32, i32
  }
  func.func @transform_1(%arg0: i32) -> (i32, i32) {
    %c0_i32 = arith.constant 0 : i32
    %c0_i32_0 = arith.constant 0 : i32
    %c0_i32_1 = arith.constant 0 : i32
    return %c0_i32, %c0_i32_0 : i32, i32
  }
  func.func @transform_2(%arg0: i32) -> (i32, i32) {
    %c0_i32 = arith.constant 0 : i32
    %c0_i32_0 = arith.constant 0 : i32
    %c0_i32_1 = arith.constant 0 : i32
    return %c0_i32, %c0_i32_0 : i32, i32
  }
  func.func @transform_3(%arg0: i32) -> (i32, i32) {
    %c0_i32 = arith.constant 0 : i32
    %c0_i32_0 = arith.constant 0 : i32
    %c0_i32_1 = arith.constant 0 : i32
    return %c0_i32, %c0_i32_0 : i32, i32
  }
  func.func @transform_4(%arg0: i32) -> (i32, i32) {
    %c0_i32 = arith.constant 0 : i32
    %c0_i32_0 = arith.constant 0 : i32
    %c0_i32_1 = arith.constant 0 : i32
    return %c0_i32, %c0_i32_0 : i32, i32
  }
  func.func @transform_5(%arg0: i32) -> (i32, i32) {
    %c0_i32 = arith.constant 0 : i32
    %c0_i32_0 = arith.constant 0 : i32
    %c0_i32_1 = arith.constant 0 : i32
    return %c0_i32, %c0_i32_0 : i32, i32
  }
  func.func @transform_6(%arg0: i32) -> (i32, i32) {
    %c0_i32 = arith.constant 0 : i32
    %c0_i32_0 = arith.constant 0 : i32
    %c0_i32_1 = arith.constant 0 : i32
    return %c0_i32, %c0_i32_0 : i32, i32
  }
}

</mosaic_0001>

<llo_original>
// kernel: lstm_model_forward.2
$region0: #{lstm_model_forward.2}
  #allocation0 [shape = 'u32[]', space=smem, size = 0x4, offset = 0x4, fixed_abs, tag = 'smem constant byte address 0x4 - core index']
  #allocation1 [shape = 'u32[144,128]{1,0:T(1,128)}', space=vmem, size = 0x12000, scoped, tag = 'internal scratch']
  #allocation2 [shape = 'f32[64,128]{1,0:T(8,128)}', space=vmem, size = 0x8000, scoped, tag = 'scratch operand']
  #allocation3 [shape = 'f32[8,32]{1,0:T(8,128)}', space=vmem, size = 0x1000, scoped, tag = 'scratch operand']
  #allocation4 [shape = 'f32[8,32]{1,0:T(8,128)}', space=vmem, size = 0x1000, scoped, tag = 'scratch operand']
  %s0 = inlined_call_operand.vmem [shape: f32[64,16], index: 0, kind: input, shape index: {}]
  %s1 = inlined_call_operand.vmem [shape: f32[16,128], index: 1, kind: input, shape index: {}]
  %s2 = inlined_call_operand.vmem [shape: f32[1,128], index: 2, kind: input, shape index: {}]
  %s3 = inlined_call_operand.vmem [shape: f32[32,128], index: 3, kind: input, shape index: {}]
  %s4 = inlined_call_operand.vmem [shape: f32[8,8,32], index: 4, kind: output, shape index: {}]
  %s5 = sld [smem:[#allocation0]]
  $region30: #{lstm_model_forward.2} parent=0
    _
  %s7 = ssub.s32 1, %s5
  %s8 = scalar_select 0, %s7, %s5
  // Predicated region
  $region2: #{lstm_model_forward.2} parent=0 // pred_check
    _
  $region3: #{lstm_model_forward.2} parent=0 // pred_check_branch
    %10 = sbr.rel (0) target = $region5
  $region4: #{lstm_model_forward.2} parent=0 // pred_region
    _
  $region5: #{lstm_model_forward.2} parent=0 // pred_fallthru
    _
  // Predicated region
  $region6: #{lstm_model_forward.2} parent=0 // pred_check
    _
  $region7: #{lstm_model_forward.2} parent=0 // pred_check_branch
    %12 = sbr.rel (0) target = $region9
  $region8: #{lstm_model_forward.2} parent=0 // pred_region
    _
  $region9: #{lstm_model_forward.2} parent=0 // pred_fallthru
    _
  // Predicated region
  $region10: #{lstm_model_forward.2} parent=0 // pred_check
    _
  $region11: #{lstm_model_forward.2} parent=0 // pred_check_branch
    %14 = sbr.rel (0) target = $region13
  $region12: #{lstm_model_forward.2} parent=0 // pred_region
    _
  $region13: #{lstm_model_forward.2} parent=0 // pred_fallthru
    _
  // Predicated region
  $region14: #{lstm_model_forward.2} parent=0 // pred_check
    _
  $region15: #{lstm_model_forward.2} parent=0 // pred_check_branch
    %16 = sbr.rel (0) target = $region17
  $region16: #{lstm_model_forward.2} parent=0 // pred_region
    _
  $region17: #{lstm_model_forward.2} parent=0 // pred_fallthru
    _
  %p17 = scmp.eq.s32.totalorder 0, 0
  // Predicated region
  $region18: #{lstm_model_forward.2} parent=0 // pred_check
    %p18 = pneg %p17
  $region19: #{lstm_model_forward.2} parent=0 // pred_check_branch
    %20 = sbr.rel (%p18) target = $region21
  $region20: #{lstm_model_forward.2} parent=0 // pred_region
    %vm21 = vcmask 261120
    %22 = vst.msk [vmem:[#allocation3] sm:$0xff] %vm21, 0.0
    %23 = vst.msk [vmem:[#allocation4] sm:$0xff] %vm21, 0.0
  $region21: #{lstm_model_forward.2} parent=0 // pred_fallthru
    _
  %v24 = vld [vmem:[%s0] sm:$0xff]
  %v25 = vld [vmem:[%s0 + $0x8] sm:$0xff]
  %v26 = vld [vmem:[%s0 + $0x10] sm:$0xff]
  %v27 = vld [vmem:[%s0 + $0x18] sm:$0xff]
  %v28 = vld [vmem:[%s0 + $0x20] sm:$0xff]
  %v29 = vld [vmem:[%s0 + $0x28] sm:$0xff]
  %v30 = vld [vmem:[%s0 + $0x30] sm:$0xff]
  %v31 = vld [vmem:[%s0 + $0x38] sm:$0xff]
  %v32 = vld [vmem:[%s1] sm:$0xff]
  %v33 = vld [vmem:[%s1 + $0x8] sm:$0xff]
  %v34 = vld [vmem:[%s2] sm:$0x1]
  %v36 = vlaneseq
  %v37 = vshrl.u32 %v36, 7
  %v38 = vsub.s32 0, %v37
  %v39 = vrot.slane %v34, %v38
  %vm41 = vcmask 130048
  %v43 = vsel %vm41, %v24, 0
  %v46 = vsel %vm41, %v25, 0
  %v49 = vsel %vm41, %v26, 0
  %v52 = vsel %vm41, %v27, 0
  %v55 = vsel %vm41, %v28, 0
  %v58 = vsel %vm41, %v29, 0
  %v61 = vsel %vm41, %v30, 0
  %v64 = vsel %vm41, %v31, 0
  %66 = vmatprep.subr.mxu0 0.0
  %67 = vmatpush1.msra.mxu0 0.0
  %68 = vmatprep.subr.mxu0 0.0
  %69 = vmatpush1.msra.mxu0 0.0
  %70 = vmatprep.subr.mxu0 0.0
  %71 = vmatpush1.msra.mxu0 0.0
  %72 = vmatprep.subr.mxu0 0.0
  %73 = vmatpush1.msra.mxu0 0.0
  %74 = vmatprep.subr.mxu0 0.0
  %75 = vmatpush1.msra.mxu0 0.0
  %76 = vmatprep.subr.mxu0 0.0
  %77 = vmatpush1.msra.mxu0 0.0
  %78 = vmatprep.subr.mxu0 0.0
  %79 = vmatpush1.msra.mxu0 0.0
  %80 = vmatprep.subr.mxu0 0.0
  %81 = vmatpush1.msra.mxu0 0.0
  %82 = vmatprep.subr.mxu0 0.0
  %83 = vmatpush1.msra.mxu0 0.0
  %84 = vmatprep.subr.mxu0 0.0
  %85 = vmatpush1.msra.mxu0 0.0
  %86 = vmatprep.subr.mxu0 0.0
  %87 = vmatpush1.msra.mxu0 0.0
  %88 = vmatprep.subr.mxu0 0.0
  %89 = vmatpush1.msra.mxu0 0.0
  %90 = vmatprep.subr.mxu0 0.0
  %91 = vmatpush1.msra.mxu0 0.0
  %92 = vmatprep.subr.mxu0 0.0
  %93 = vmatpush1.msra.mxu0 0.0
  %94 = vmatprep.subr.mxu0 0.0
  %95 = vmatpush1.msra.mxu0 %v33
  %96 = vmatprep.subr.mxu0 0.0
  %97 = vmatpush1.msra.mxu0 %v32
  %98 = vmatprep.subr.mxu0 0.0
  %99 = vmatpush2.msra.mxu0 0.0
  %100 = vmatprep.subr.mxu0 0.0
  %101 = vmatpush2.msra.mxu0 0.0
  %102 = vmatprep.subr.mxu0 0.0
  %103 = vmatpush2.msra.mxu0 0.0
  %104 = vmatprep.subr.mxu0 0.0
  %105 = vmatpush2.msra.mxu0 0.0
  %106 = vmatprep.subr.mxu0 0.0
  %107 = vmatpush2.msra.mxu0 0.0
  %108 = vmatprep.subr.mxu0 0.0
  %109 = vmatpush2.msra.mxu0 0.0
  %110 = vmatprep.subr.mxu0 0.0
  %111 = vmatpush2.msra.mxu0 0.0
  %112 = vmatprep.subr.mxu0 0.0
  %113 = vmatpush2.msra.mxu0 0.0
  %114 = vmatprep.subr.mxu0 0.0
  %115 = vmatpush2.msra.mxu0 0.0
  %116 = vmatprep.subr.mxu0 0.0
  %117 = vmatpush2.msra.mxu0 0.0
  %118 = vmatprep.subr.mxu0 0.0
  %119 = vmatpush2.msra.mxu0 0.0
  %120 = vmatprep.subr.mxu0 0.0
  %121 = vmatpush2.msra.mxu0 0.0
  %122 = vmatprep.subr.mxu0 0.0
  %123 = vmatpush2.msra.mxu0 0.0
  %124 = vmatprep.subr.mxu0 0.0
  %125 = vmatpush2.msra.mxu0 0.0
  %126 = vmatprep.subr.mxu0 0.0
  %127 = vmatpush2.msra.mxu0 0.0
  %128 = vmatprep.subr.mxu0 0.0
  %129 = vmatpush2.msra.mxu0 0.0
  %130 = vmatprep.mubr.f32.mxu0 0.0
  %131 = vmatmul.mubr.f32.gmra.mxu0 %v43
  %v132 = vpop.f32.mrf.mxu0
  %v133 = vadd.f32 %v39, %v132
  %v134 = vpop.f32.mrf.mxu0
  %135 = vmatprep.mubr.f32.mxu0 0.0
  %136 = vmatmul.mubr.f32.gmra.mxu0 %v46
  %v137 = vpop.f32.mrf.mxu0
  %v138 = vadd.f32 %v39, %v137
  %v139 = vpop.f32.mrf.mxu0
  %140 = vmatprep.mubr.f32.mxu0 0.0
  %141 = vmatmul.mubr.f32.gmra.mxu0 %v49
  %v142 = vpop.f32.mrf.mxu0
  %v143 = vadd.f32 %v39, %v142
  %v144 = vpop.f32.mrf.mxu0
  %145 = vmatprep.mubr.f32.mxu0 0.0
  %146 = vmatmul.mubr.f32.gmra.mxu0 %v52
  %v147 = vpop.f32.mrf.mxu0
  %v148 = vadd.f32 %v39, %v147
  %v149 = vpop.f32.mrf.mxu0
  %150 = vmatprep.mubr.f32.mxu0 0.0
  %151 = vmatmul.mubr.f32.gmra.mxu0 %v55
  %v152 = vpop.f32.mrf.mxu0
  %v153 = vadd.f32 %v39, %v152
  %v154 = vpop.f32.mrf.mxu0
  %155 = vmatprep.mubr.f32.mxu0 0.0
  %156 = vmatmul.mubr.f32.gmra.mxu0 %v58
  %v157 = vpop.f32.mrf.mxu0
  %v158 = vadd.f32 %v39, %v157
  %v159 = vpop.f32.mrf.mxu0
  %160 = vmatprep.mubr.f32.mxu0 0.0
  %161 = vmatmul.mubr.f32.gmra.mxu0 %v61
  %v162 = vpop.f32.mrf.mxu0
  %v163 = vadd.f32 %v39, %v162
  %v164 = vpop.f32.mrf.mxu0
  %165 = vmatprep.mubr.f32.mxu0 0.0
  %166 = vmatmul.mubr.f32.gmra.mxu0 %v64
  %v167 = vpop.f32.mrf.mxu0
  %v168 = vadd.f32 %v39, %v167
  %v169 = vpop.f32.mrf.mxu0
  %170 = vdwg.mxu0
  %171 = vst [vmem:[#allocation2] sm:$0xff] %v133
  %172 = vst [vmem:[#allocation2 + $0x8] sm:$0xff] %v138
  %173 = vst [vmem:[#allocation2 + $0x10] sm:$0xff] %v143
  %174 = vst [vmem:[#allocation2 + $0x18] sm:$0xff] %v148
  %175 = vst [vmem:[#allocation2 + $0x20] sm:$0xff] %v153
  %176 = vst [vmem:[#allocation2 + $0x28] sm:$0xff] %v158
  %177 = vst [vmem:[#allocation2 + $0x30] sm:$0xff] %v163
  %178 = vst [vmem:[#allocation2 + $0x38] sm:$0xff] %v168
  %v179 = vld [vmem:[%s3] sm:$0xff]
  %v180 = vld [vmem:[%s3 + $0x8] sm:$0xff]
  %v181 = vld [vmem:[%s3 + $0x10] sm:$0xff]
  %v182 = vld [vmem:[%s3 + $0x18] sm:$0xff]
  %v183 = vld [vmem:[#allocation3] sm:$0xff]
  %v184 = vld [vmem:[#allocation4] sm:$0xff]
  %v185 = vld [vmem:[#allocation2] sm:$0xff]
  %vm186 = vcmask 261120
  %v188 = vsel %vm186, %v183, 0
  %190 = vmatprep.subr.mxu0 0.0
  %191 = vmatpush1.msra.mxu0 0.0
  %192 = vmatprep.subr.mxu0 0.0
  %193 = vmatpush1.msra.mxu0 0.0
  %194 = vmatprep.subr.mxu0 0.0
  %195 = vmatpush1.msra.mxu0 0.0
  %196 = vmatprep.subr.mxu0 0.0
  %197 = vmatpush1.msra.mxu0 0.0
  %198 = vmatprep.subr.mxu0 0.0
  %199 = vmatpush1.msra.mxu0 0.0
  %200 = vmatprep.subr.mxu0 0.0
  %201 = vmatpush1.msra.mxu0 0.0
  %202 = vmatprep.subr.mxu0 0.0
  %203 = vmatpush1.msra.mxu0 0.0
  %204 = vmatprep.subr.mxu0 0.0
  %205 = vmatpush1.msra.mxu0 0.0
  %206 = vmatprep.subr.mxu0 0.0
  %207 = vmatpush1.msra.mxu0 0.0
  %208 = vmatprep.subr.mxu0 0.0
  %209 = vmatpush1.msra.mxu0 0.0
  %210 = vmatprep.subr.mxu0 0.0
  %211 = vmatpush1.msra.mxu0 0.0
  %212 = vmatprep.subr.mxu0 0.0
  %213 = vmatpush1.msra.mxu0 0.0
  %214 = vmatprep.subr.mxu0 0.0
  %215 = vmatpush1.msra.mxu0 %v182
  %216 = vmatprep.subr.mxu0 0.0
  %217 = vmatpush1.msra.mxu0 %v181
  %218 = vmatprep.subr.mxu0 0.0
  %219 = vmatpush1.msra.mxu0 %v180
  %220 = vmatprep.subr.mxu0 0.0
  %221 = vmatpush1.msra.mxu0 %v179
  %222 = vmatprep.subr.mxu0 0.0
  %223 = vmatpush2.msra.mxu0 0.0
  %224 = vmatprep.subr.mxu0 0.0
  %225 = vmatpush2.msra.mxu0 0.0
  %226 = vmatprep.subr.mxu0 0.0
  %227 = vmatpush2.msra.mxu0 0.0
  %228 = vmatprep.subr.mxu0 0.0
  %229 = vmatpush2.msra.mxu0 0.0
  %230 = vmatprep.subr.mxu0 0.0
  %231 = vmatpush2.msra.mxu0 0.0
  %232 = vmatprep.subr.mxu0 0.0
  %233 = vmatpush2.msra.mxu0 0.0
  %234 = vmatprep.subr.mxu0 0.0
  %235 = vmatpush2.msra.mxu0 0.0
  %236 = vmatprep.subr.mxu0 0.0
  %237 = vmatpush2.msra.mxu0 0.0
  %238 = vmatprep.subr.mxu0 0.0
  %239 = vmatpush2.msra.mxu0 0.0
  %240 = vmatprep.subr.mxu0 0.0
  %241 = vmatpush2.msra.mxu0 0.0
  %242 = vmatprep.subr.mxu0 0.0
  %243 = vmatpush2.msra.mxu0 0.0
  %244 = vmatprep.subr.mxu0 0.0
  %245 = vmatpush2.msra.mxu0 0.0
  %246 = vmatprep.subr.mxu0 0.0
  %247 = vmatpush2.msra.mxu0 0.0
  %248 = vmatprep.subr.mxu0 0.0
  %249 = vmatpush2.msra.mxu0 0.0
  %250 = vmatprep.subr.mxu0 0.0
  %251 = vmatpush2.msra.mxu0 0.0
  %252 = vmatprep.subr.mxu0 0.0
  %253 = vmatpush2.msra.mxu0 0.0
  %254 = vmatprep.mubr.f32.mxu0 0.0
  %255 = vmatmul.mubr.f32.gmra.mxu0 %v188
  %v256 = vpop.f32.mrf.mxu0
  %v257 = vadd.f32 0.0, %v256
  %v258 = vpop.f32.mrf.mxu0
  %259 = vdwg.mxu0
  %v260 = vadd.f32 %v185, %v257
  %v261 = vxor.u32 %v260, 2147483648
  %v262 = vmul.f32 %v261, 1.442695
  %v263 = vpow.pop %v262
  %v264 = vadd.f32 %v263, 1.0
  %v265 = vrcp.pop %v264
  %v266 = vmul.f32 1.0, %v265
  %v267 = vtanh.pop %v260
  %269 = vrot.lane.b32.xlu0 %v184, 32
  %v270 = vpop.permute.xlu0 %269
  %v272 = vmul.f32 %v266, %v270
  %274 = vrot.lane.b32.xlu0 %v267, 32
  %v275 = vpop.permute.xlu0 %274
  %v277 = vmul.f32 %v266, %v275
  %279 = vrot.lane.b32.xlu0 %v277, 32
  %v280 = vpop.permute.xlu0 %279
  %v282 = vadd.f32 %v272, %v280
  %v283 = vtanh.pop %v282
  %285 = vrot.lane.b32.xlu0 %v283, 32
  %v286 = vpop.permute.xlu0 %285
  %v288 = vmul.f32 %v266, %v286
  %290 = vrot.lane.b32.xlu0 %v288, 64
  %v291 = vpop.permute.xlu0 %290
  %293 = vst.msk [vmem:[%s4] sm:$0xff] %vm186, %v291
  %s294 = scalar_lea.vmem [#allocation2], 8
  %v295 = vld [vmem:[%s294] sm:$0xff]
  %v296 = vsel %vm186, %v291, 0
  %298 = vmatprep.subr.mxu0 0.0
  %299 = vmatpush1.msra.mxu0 0.0
  %300 = vmatprep.subr.mxu0 0.0
  %301 = vmatpush1.msra.mxu0 0.0
  %302 = vmatprep.subr.mxu0 0.0
  %303 = vmatpush1.msra.mxu0 0.0
  %304 = vmatprep.subr.mxu0 0.0
  %305 = vmatpush1.msra.mxu0 0.0
  %306 = vmatprep.subr.mxu0 0.0
  %307 = vmatpush1.msra.mxu0 0.0
  %308 = vmatprep.subr.mxu0 0.0
  %309 = vmatpush1.msra.mxu0 0.0
  %310 = vmatprep.subr.mxu0 0.0
  %311 = vmatpush1.msra.mxu0 0.0
  %312 = vmatprep.subr.mxu0 0.0
  %313 = vmatpush1.msra.mxu0 0.0
  %314 = vmatprep.subr.mxu0 0.0
  %315 = vmatpush1.msra.mxu0 0.0
  %316 = vmatprep.subr.mxu0 0.0
  %317 = vmatpush1.msra.mxu0 0.0
  %318 = vmatprep.subr.mxu0 0.0
  %319 = vmatpush1.msra.mxu0 0.0
  %320 = vmatprep.subr.mxu0 0.0
  %321 = vmatpush1.msra.mxu0 0.0
  %322 = vmatprep.subr.mxu0 0.0
  %323 = vmatpush1.msra.mxu0 %v182
  %324 = vmatprep.subr.mxu0 0.0
  %325 = vmatpush1.msra.mxu0 %v181
  %326 = vmatprep.subr.mxu0 0.0
  %327 = vmatpush1.msra.mxu0 %v180
  %328 = vmatprep.subr.mxu0 0.0
  %329 = vmatpush1.msra.mxu0 %v179
  %330 = vmatprep.subr.mxu0 0.0
  %331 = vmatpush2.msra.mxu0 0.0
  %332 = vmatprep.subr.mxu0 0.0
  %333 = vmatpush2.msra.mxu0 0.0
  %334 = vmatprep.subr.mxu0 0.0
  %335 = vmatpush2.msra.mxu0 0.0
  %336 = vmatprep.subr.mxu0 0.0
  %337 = vmatpush2.msra.mxu0 0.0
  %338 = vmatprep.subr.mxu0 0.0
  %339 = vmatpush2.msra.mxu0 0.0
  %340 = vmatprep.subr.mxu0 0.0
  %341 = vmatpush2.msra.mxu0 0.0
  %342 = vmatprep.subr.mxu0 0.0
  %343 = vmatpush2.msra.mxu0 0.0
  %344 = vmatprep.subr.mxu0 0.0
  %345 = vmatpush2.msra.mxu0 0.0
  %346 = vmatprep.subr.mxu0 0.0
  %347 = vmatpush2.msra.mxu0 0.0
  %348 = vmatprep.subr.mxu0 0.0
  %349 = vmatpush2.msra.mxu0 0.0
  %350 = vmatprep.subr.mxu0 0.0
  %351 = vmatpush2.msra.mxu0 0.0
  %352 = vmatprep.subr.mxu0 0.0
  %353 = vmatpush2.msra.mxu0 0.0
  %354 = vmatprep.subr.mxu0 0.0
  %355 = vmatpush2.msra.mxu0 0.0
  %356 = vmatprep.subr.mxu0 0.0
  %357 = vmatpush2.msra.mxu0 0.0
  %358 = vmatprep.subr.mxu0 0.0
  %359 = vmatpush2.msra.mxu0 0.0
  %360 = vmatprep.subr.mxu0 0.0
  %361 = vmatpush2.msra.mxu0 0.0
  %362 = vmatprep.mubr.f32.mxu0 0.0
  %363 = vmatmul.mubr.f32.gmra.mxu0 %v296
  %v364 = vpop.f32.mrf.mxu0
  %v365 = vadd.f32 0.0, %v364
  %v366 = vpop.f32.mrf.mxu0
  %367 = vdwg.mxu0
  %v368 = vadd.f32 %v295, %v365
  %v369 = vxor.u32 %v368, 2147483648
  %v370 = vmul.f32 %v369, 1.442695
  %v371 = vpow.pop %v370
  %v372 = vadd.f32 %v371, 1.0
  %v373 = vrcp.pop %v372
  %v374 = vmul.f32 1.0, %v373
  %v375 = vtanh.pop %v368
  %v376 = vmul.f32 %v374, %v282
  %378 = vrot.lane.b32.xlu0 %v375, 32
  %v379 = vpop.permute.xlu0 %378
  %v381 = vmul.f32 %v374, %v379
  %383 = vrot.lane.b32.xlu0 %v381, 32
  %v384 = vpop.permute.xlu0 %383
  %v386 = vadd.f32 %v376, %v384
  %v387 = vtanh.pop %v386
  %389 = vrot.lane.b32.xlu0 %v387, 32
  %v390 = vpop.permute.xlu0 %389
  %v392 = vmul.f32 %v374, %v390
  %394 = vrot.lane.b32.xlu0 %v392, 64
  %v395 = vpop.permute.xlu0 %394
  %s397 = scalar_lea.vmem %s4, 8
  %398 = vst.msk [vmem:[%s397] sm:$0xff] %vm186, %v395
  %s399 = scalar_lea.vmem [#allocation2], 16
  %v400 = vld [vmem:[%s399] sm:$0xff]
  %v401 = vsel %vm186, %v395, 0
  %403 = vmatprep.subr.mxu0 0.0
  %404 = vmatpush1.msra.mxu0 0.0
  %405 = vmatprep.subr.mxu0 0.0
  %406 = vmatpush1.msra.mxu0 0.0
  %407 = vmatprep.subr.mxu0 0.0
  %408 = vmatpush1.msra.mxu0 0.0
  %409 = vmatprep.subr.mxu0 0.0
  %410 = vmatpush1.msra.mxu0 0.0
  %411 = vmatprep.subr.mxu0 0.0
  %412 = vmatpush1.msra.mxu0 0.0
  %413 = vmatprep.subr.mxu0 0.0
  %414 = vmatpush1.msra.mxu0 0.0
  %415 = vmatprep.subr.mxu0 0.0
  %416 = vmatpush1.msra.mxu0 0.0
  %417 = vmatprep.subr.mxu0 0.0
  %418 = vmatpush1.msra.mxu0 0.0
  %419 = vmatprep.subr.mxu0 0.0
  %420 = vmatpush1.msra.mxu0 0.0
  %421 = vmatprep.subr.mxu0 0.0
  %422 = vmatpush1.msra.mxu0 0.0
  %423 = vmatprep.subr.mxu0 0.0
  %424 = vmatpush1.msra.mxu0 0.0
  %425 = vmatprep.subr.mxu0 0.0
  %426 = vmatpush1.msra.mxu0 0.0
  %427 = vmatprep.subr.mxu0 0.0
  %428 = vmatpush1.msra.mxu0 %v182
  %429 = vmatprep.subr.mxu0 0.0
  %430 = vmatpush1.msra.mxu0 %v181
  %431 = vmatprep.subr.mxu0 0.0
  %432 = vmatpush1.msra.mxu0 %v180
  %433 = vmatprep.subr.mxu0 0.0
  %434 = vmatpush1.msra.mxu0 %v179
  %435 = vmatprep.subr.mxu0 0.0
  %436 = vmatpush2.msra.mxu0 0.0
  %437 = vmatprep.subr.mxu0 0.0
  %438 = vmatpush2.msra.mxu0 0.0
  %439 = vmatprep.subr.mxu0 0.0
  %440 = vmatpush2.msra.mxu0 0.0
  %441 = vmatprep.subr.mxu0 0.0
  %442 = vmatpush2.msra.mxu0 0.0
  %443 = vmatprep.subr.mxu0 0.0
  %444 = vmatpush2.msra.mxu0 0.0
  %445 = vmatprep.subr.mxu0 0.0
  %446 = vmatpush2.msra.mxu0 0.0
  %447 = vmatprep.subr.mxu0 0.0
  %448 = vmatpush2.msra.mxu0 0.0
  %449 = vmatprep.subr.mxu0 0.0
  %450 = vmatpush2.msra.mxu0 0.0
  %451 = vmatprep.subr.mxu0 0.0
  %452 = vmatpush2.msra.mxu0 0.0
  %453 = vmatprep.subr.mxu0 0.0
  %454 = vmatpush2.msra.mxu0 0.0
  %455 = vmatprep.subr.mxu0 0.0
  %456 = vmatpush2.msra.mxu0 0.0
  %457 = vmatprep.subr.mxu0 0.0
  %458 = vmatpush2.msra.mxu0 0.0
  %459 = vmatprep.subr.mxu0 0.0
  %460 = vmatpush2.msra.mxu0 0.0
  %461 = vmatprep.subr.mxu0 0.0
  %462 = vmatpush2.msra.mxu0 0.0
  %463 = vmatprep.subr.mxu0 0.0
  %464 = vmatpush2.msra.mxu0 0.0
  %465 = vmatprep.subr.mxu0 0.0
  %466 = vmatpush2.msra.mxu0 0.0
  %467 = vmatprep.mubr.f32.mxu0 0.0
  %468 = vmatmul.mubr.f32.gmra.mxu0 %v401
  %v469 = vpop.f32.mrf.mxu0
  %v470 = vadd.f32 0.0, %v469
  %v471 = vpop.f32.mrf.mxu0
  %472 = vdwg.mxu0
  %v473 = vadd.f32 %v400, %v470
  %v474 = vxor.u32 %v473, 2147483648
  %v475 = vmul.f32 %v474, 1.442695
  %v476 = vpow.pop %v475
  %v477 = vadd.f32 %v476, 1.0
  %v478 = vrcp.pop %v477
  %v479 = vmul.f32 1.0, %v478
  %v480 = vtanh.pop %v473
  %v481 = vmul.f32 %v479, %v386
  %483 = vrot.lane.b32.xlu0 %v480, 32
  %v484 = vpop.permute.xlu0 %483
  %v486 = vmul.f32 %v479, %v484
  %488 = vrot.lane.b32.xlu0 %v486, 32
  %v489 = vpop.permute.xlu0 %488
  %v491 = vadd.f32 %v481, %v489
  %v492 = vtanh.pop %v491
  %494 = vrot.lane.b32.xlu0 %v492, 32
  %v495 = vpop.permute.xlu0 %494
  %v497 = vmul.f32 %v479, %v495
  %499 = vrot.lane.b32.xlu0 %v497, 64
  %v500 = vpop.permute.xlu0 %499
  %s502 = scalar_lea.vmem %s4, 16
  %503 = vst.msk [vmem:[%s502] sm:$0xff] %vm186, %v500
  %s504 = scalar_lea.vmem [#allocation2], 24
  %v505 = vld [vmem:[%s504] sm:$0xff]
  %v506 = vsel %vm186, %v500, 0
  %508 = vmatprep.subr.mxu0 0.0
  %509 = vmatpush1.msra.mxu0 0.0
  %510 = vmatprep.subr.mxu0 0.0
  %511 = vmatpush1.msra.mxu0 0.0
  %512 = vmatprep.subr.mxu0 0.0
  %513 = vmatpush1.msra.mxu0 0.0
  %514 = vmatprep.subr.mxu0 0.0
  %515 = vmatpush1.msra.mxu0 0.0
  %516 = vmatprep.subr.mxu0 0.0
  %517 = vmatpush1.msra.mxu0 0.0
  %518 = vmatprep.subr.mxu0 0.0
  %519 = vmatpush1.msra.mxu0 0.0
  %520 = vmatprep.subr.mxu0 0.0
  %521 = vmatpush1.msra.mxu0 0.0
  %522 = vmatprep.subr.mxu0 0.0
  %523 = vmatpush1.msra.mxu0 0.0
  %524 = vmatprep.subr.mxu0 0.0
  %525 = vmatpush1.msra.mxu0 0.0
  %526 = vmatprep.subr.mxu0 0.0
  %527 = vmatpush1.msra.mxu0 0.0
  %528 = vmatprep.subr.mxu0 0.0
  %529 = vmatpush1.msra.mxu0 0.0
  %530 = vmatprep.subr.mxu0 0.0
  %531 = vmatpush1.msra.mxu0 0.0
  %532 = vmatprep.subr.mxu0 0.0
  %533 = vmatpush1.msra.mxu0 %v182
  %534 = vmatprep.subr.mxu0 0.0
  %535 = vmatpush1.msra.mxu0 %v181
  %536 = vmatprep.subr.mxu0 0.0
  %537 = vmatpush1.msra.mxu0 %v180
  %538 = vmatprep.subr.mxu0 0.0
  %539 = vmatpush1.msra.mxu0 %v179
  %540 = vmatprep.subr.mxu0 0.0
  %541 = vmatpush2.msra.mxu0 0.0
  %542 = vmatprep.subr.mxu0 0.0
  %543 = vmatpush2.msra.mxu0 0.0
  %544 = vmatprep.subr.mxu0 0.0
  %545 = vmatpush2.msra.mxu0 0.0
  %546 = vmatprep.subr.mxu0 0.0
  %547 = vmatpush2.msra.mxu0 0.0
  %548 = vmatprep.subr.mxu0 0.0
  %549 = vmatpush2.msra.mxu0 0.0
  %550 = vmatprep.subr.mxu0 0.0
  %551 = vmatpush2.msra.mxu0 0.0
  %552 = vmatprep.subr.mxu0 0.0
  %553 = vmatpush2.msra.mxu0 0.0
  %554 = vmatprep.subr.mxu0 0.0
  %555 = vmatpush2.msra.mxu0 0.0
  %556 = vmatprep.subr.mxu0 0.0
  %557 = vmatpush2.msra.mxu0 0.0
  %558 = vmatprep.subr.mxu0 0.0
  %559 = vmatpush2.msra.mxu0 0.0
  %560 = vmatprep.subr.mxu0 0.0
  %561 = vmatpush2.msra.mxu0 0.0
  %562 = vmatprep.subr.mxu0 0.0
  %563 = vmatpush2.msra.mxu0 0.0
  %564 = vmatprep.subr.mxu0 0.0
  %565 = vmatpush2.msra.mxu0 0.0
  %566 = vmatprep.subr.mxu0 0.0
  %567 = vmatpush2.msra.mxu0 0.0
  %568 = vmatprep.subr.mxu0 0.0
  %569 = vmatpush2.msra.mxu0 0.0
  %570 = vmatprep.subr.mxu0 0.0
  %571 = vmatpush2.msra.mxu0 0.0
  %572 = vmatprep.mubr.f32.mxu0 0.0
  %573 = vmatmul.mubr.f32.gmra.mxu0 %v506
  %v574 = vpop.f32.mrf.mxu0
  %v575 = vadd.f32 0.0, %v574
  %v576 = vpop.f32.mrf.mxu0
  %577 = vdwg.mxu0
  %v578 = vadd.f32 %v505, %v575
  %v579 = vxor.u32 %v578, 2147483648
  %v580 = vmul.f32 %v579, 1.442695
  %v581 = vpow.pop %v580
  %v582 = vadd.f32 %v581, 1.0
  %v583 = vrcp.pop %v582
  %v584 = vmul.f32 1.0, %v583
  %v585 = vtanh.pop %v578
  %v586 = vmul.f32 %v584, %v491
  %588 = vrot.lane.b32.xlu0 %v585, 32
  %v589 = vpop.permute.xlu0 %588
  %v591 = vmul.f32 %v584, %v589
  %593 = vrot.lane.b32.xlu0 %v591, 32
  %v594 = vpop.permute.xlu0 %593
  %v596 = vadd.f32 %v586, %v594
  %v597 = vtanh.pop %v596
  %599 = vrot.lane.b32.xlu0 %v597, 32
  %v600 = vpop.permute.xlu0 %599
  %v602 = vmul.f32 %v584, %v600
  %604 = vrot.lane.b32.xlu0 %v602, 64
  %v605 = vpop.permute.xlu0 %604
  %s607 = scalar_lea.vmem %s4, 24
  %608 = vst.msk [vmem:[%s607] sm:$0xff] %vm186, %v605
  %s609 = scalar_lea.vmem [#allocation2], 32
  %v610 = vld [vmem:[%s609] sm:$0xff]
  %v611 = vsel %vm186, %v605, 0
  %613 = vmatprep.subr.mxu0 0.0
  %614 = vmatpush1.msra.mxu0 0.0
  %615 = vmatprep.subr.mxu0 0.0
  %616 = vmatpush1.msra.mxu0 0.0
  %617 = vmatprep.subr.mxu0 0.0
  %618 = vmatpush1.msra.mxu0 0.0
  %619 = vmatprep.subr.mxu0 0.0
  %620 = vmatpush1.msra.mxu0 0.0
  %621 = vmatprep.subr.mxu0 0.0
  %622 = vmatpush1.msra.mxu0 0.0
  %623 = vmatprep.subr.mxu0 0.0
  %624 = vmatpush1.msra.mxu0 0.0
  %625 = vmatprep.subr.mxu0 0.0
  %626 = vmatpush1.msra.mxu0 0.0
  %627 = vmatprep.subr.mxu0 0.0
  %628 = vmatpush1.msra.mxu0 0.0
  %629 = vmatprep.subr.mxu0 0.0
  %630 = vmatpush1.msra.mxu0 0.0
  %631 = vmatprep.subr.mxu0 0.0
  %632 = vmatpush1.msra.mxu0 0.0
  %633 = vmatprep.subr.mxu0 0.0
  %634 = vmatpush1.msra.mxu0 0.0
  %635 = vmatprep.subr.mxu0 0.0
  %636 = vmatpush1.msra.mxu0 0.0
  %637 = vmatprep.subr.mxu0 0.0
  %638 = vmatpush1.msra.mxu0 %v182
  %639 = vmatprep.subr.mxu0 0.0
  %640 = vmatpush1.msra.mxu0 %v181
  %641 = vmatprep.subr.mxu0 0.0
  %642 = vmatpush1.msra.mxu0 %v180
  %643 = vmatprep.subr.mxu0 0.0
  %644 = vmatpush1.msra.mxu0 %v179
  %645 = vmatprep.subr.mxu0 0.0
  %646 = vmatpush2.msra.mxu0 0.0
  %647 = vmatprep.subr.mxu0 0.0
  %648 = vmatpush2.msra.mxu0 0.0
  %649 = vmatprep.subr.mxu0 0.0
  %650 = vmatpush2.msra.mxu0 0.0
  %651 = vmatprep.subr.mxu0 0.0
  %652 = vmatpush2.msra.mxu0 0.0
  %653 = vmatprep.subr.mxu0 0.0
  %654 = vmatpush2.msra.mxu0 0.0
  %655 = vmatprep.subr.mxu0 0.0
  %656 = vmatpush2.msra.mxu0 0.0
  %657 = vmatprep.subr.mxu0 0.0
  %658 = vmatpush2.msra.mxu0 0.0
  %659 = vmatprep.subr.mxu0 0.0
  %660 = vmatpush2.msra.mxu0 0.0
  %661 = vmatprep.subr.mxu0 0.0
  %662 = vmatpush2.msra.mxu0 0.0
  %663 = vmatprep.subr.mxu0 0.0
  %664 = vmatpush2.msra.mxu0 0.0
  %665 = vmatprep.subr.mxu0 0.0
  %666 = vmatpush2.msra.mxu0 0.0
  %667 = vmatprep.subr.mxu0 0.0
  %668 = vmatpush2.msra.mxu0 0.0
  %669 = vmatprep.subr.mxu0 0.0
  %670 = vmatpush2.msra.mxu0 0.0
  %671 = vmatprep.subr.mxu0 0.0
  %672 = vmatpush2.msra.mxu0 0.0
  %673 = vmatprep.subr.mxu0 0.0
  %674 = vmatpush2.msra.mxu0 0.0
  %675 = vmatprep.subr.mxu0 0.0
  %676 = vmatpush2.msra.mxu0 0.0
  %677 = vmatprep.mubr.f32.mxu0 0.0
  %678 = vmatmul.mubr.f32.gmra.mxu0 %v611
  %v679 = vpop.f32.mrf.mxu0
  %v680 = vadd.f32 0.0, %v679
  %v681 = vpop.f32.mrf.mxu0
  %682 = vdwg.mxu0
  %v683 = vadd.f32 %v610, %v680
  %v684 = vxor.u32 %v683, 2147483648
  %v685 = vmul.f32 %v684, 1.442695
  %v686 = vpow.pop %v685
  %v687 = vadd.f32 %v686, 1.0
  %v688 = vrcp.pop %v687
  %v689 = vmul.f32 1.0, %v688
  %v690 = vtanh.pop %v683
  %v691 = vmul.f32 %v689, %v596
  %693 = vrot.lane.b32.xlu0 %v690, 32
  %v694 = vpop.permute.xlu0 %693
  %v696 = vmul.f32 %v689, %v694
  %698 = vrot.lane.b32.xlu0 %v696, 32
  %v699 = vpop.permute.xlu0 %698
  %v701 = vadd.f32 %v691, %v699
  %v702 = vtanh.pop %v701
  %704 = vrot.lane.b32.xlu0 %v702, 32
  %v705 = vpop.permute.xlu0 %704
  %v707 = vmul.f32 %v689, %v705
  %709 = vrot.lane.b32.xlu0 %v707, 64
  %v710 = vpop.permute.xlu0 %709
  %s712 = scalar_lea.vmem %s4, 32
  %713 = vst.msk [vmem:[%s712] sm:$0xff] %vm186, %v710
  %s714 = scalar_lea.vmem [#allocation2], 40
  %v715 = vld [vmem:[%s714] sm:$0xff]
  %v716 = vsel %vm186, %v710, 0
  %718 = vmatprep.subr.mxu0 0.0
  %719 = vmatpush1.msra.mxu0 0.0
  %720 = vmatprep.subr.mxu0 0.0
  %721 = vmatpush1.msra.mxu0 0.0
  %722 = vmatprep.subr.mxu0 0.0
  %723 = vmatpush1.msra.mxu0 0.0
  %724 = vmatprep.subr.mxu0 0.0
  %725 = vmatpush1.msra.mxu0 0.0
  %726 = vmatprep.subr.mxu0 0.0
  %727 = vmatpush1.msra.mxu0 0.0
  %728 = vmatprep.subr.mxu0 0.0
  %729 = vmatpush1.msra.mxu0 0.0
  %730 = vmatprep.subr.mxu0 0.0
  %731 = vmatpush1.msra.mxu0 0.0
  %732 = vmatprep.subr.mxu0 0.0
  %733 = vmatpush1.msra.mxu0 0.0
  %734 = vmatprep.subr.mxu0 0.0
  %735 = vmatpush1.msra.mxu0 0.0
  %736 = vmatprep.subr.mxu0 0.0
  %737 = vmatpush1.msra.mxu0 0.0
  %738 = vmatprep.subr.mxu0 0.0
  %739 = vmatpush1.msra.mxu0 0.0
  %740 = vmatprep.subr.mxu0 0.0
  %741 = vmatpush1.msra.mxu0 0.0
  %742 = vmatprep.subr.mxu0 0.0
  %743 = vmatpush1.msra.mxu0 %v182
  %744 = vmatprep.subr.mxu0 0.0
  %745 = vmatpush1.msra.mxu0 %v181
  %746 = vmatprep.subr.mxu0 0.0
  %747 = vmatpush1.msra.mxu0 %v180
  %748 = vmatprep.subr.mxu0 0.0
  %749 = vmatpush1.msra.mxu0 %v179
  %750 = vmatprep.subr.mxu0 0.0
  %751 = vmatpush2.msra.mxu0 0.0
  %752 = vmatprep.subr.mxu0 0.0
  %753 = vmatpush2.msra.mxu0 0.0
  %754 = vmatprep.subr.mxu0 0.0
  %755 = vmatpush2.msra.mxu0 0.0
  %756 = vmatprep.subr.mxu0 0.0
  %757 = vmatpush2.msra.mxu0 0.0
  %758 = vmatprep.subr.mxu0 0.0
  %759 = vmatpush2.msra.mxu0 0.0
  %760 = vmatprep.subr.mxu0 0.0
  %761 = vmatpush2.msra.mxu0 0.0
  %762 = vmatprep.subr.mxu0 0.0
  %763 = vmatpush2.msra.mxu0 0.0
  %764 = vmatprep.subr.mxu0 0.0
  %765 = vmatpush2.msra.mxu0 0.0
  %766 = vmatprep.subr.mxu0 0.0
  %767 = vmatpush2.msra.mxu0 0.0
  %768 = vmatprep.subr.mxu0 0.0
  %769 = vmatpush2.msra.mxu0 0.0
  %770 = vmatprep.subr.mxu0 0.0
  %771 = vmatpush2.msra.mxu0 0.0
  %772 = vmatprep.subr.mxu0 0.0
  %773 = vmatpush2.msra.mxu0 0.0
  %774 = vmatprep.subr.mxu0 0.0
  %775 = vmatpush2.msra.mxu0 0.0
  %776 = vmatprep.subr.mxu0 0.0
  %777 = vmatpush2.msra.mxu0 0.0
  %778 = vmatprep.subr.mxu0 0.0
  %779 = vmatpush2.msra.mxu0 0.0
  %780 = vmatprep.subr.mxu0 0.0
  %781 = vmatpush2.msra.mxu0 0.0
  %782 = vmatprep.mubr.f32.mxu0 0.0
  %783 = vmatmul.mubr.f32.gmra.mxu0 %v716
  %v784 = vpop.f32.mrf.mxu0
  %v785 = vadd.f32 0.0, %v784
  %v786 = vpop.f32.mrf.mxu0
  %787 = vdwg.mxu0
  %v788 = vadd.f32 %v715, %v785
  %v789 = vxor.u32 %v788, 2147483648
  %v790 = vmul.f32 %v789, 1.442695
  %v791 = vpow.pop %v790
  %v792 = vadd.f32 %v791, 1.0
  %v793 = vrcp.pop %v792
  %v794 = vmul.f32 1.0, %v793
  %v795 = vtanh.pop %v788
  %v796 = vmul.f32 %v794, %v701
  %798 = vrot.lane.b32.xlu0 %v795, 32
  %v799 = vpop.permute.xlu0 %798
  %v801 = vmul.f32 %v794, %v799
  %803 = vrot.lane.b32.xlu0 %v801, 32
  %v804 = vpop.permute.xlu0 %803
  %v806 = vadd.f32 %v796, %v804
  %v807 = vtanh.pop %v806
  %809 = vrot.lane.b32.xlu0 %v807, 32
  %v810 = vpop.permute.xlu0 %809
  %v812 = vmul.f32 %v794, %v810
  %814 = vrot.lane.b32.xlu0 %v812, 64
  %v815 = vpop.permute.xlu0 %814
  %s817 = scalar_lea.vmem %s4, 40
  %818 = vst.msk [vmem:[%s817] sm:$0xff] %vm186, %v815
  %s819 = scalar_lea.vmem [#allocation2], 48
  %v820 = vld [vmem:[%s819] sm:$0xff]
  %v821 = vsel %vm186, %v815, 0
  %823 = vmatprep.subr.mxu0 0.0
  %824 = vmatpush1.msra.mxu0 0.0
  %825 = vmatprep.subr.mxu0 0.0
  %826 = vmatpush1.msra.mxu0 0.0
  %827 = vmatprep.subr.mxu0 0.0
  %828 = vmatpush1.msra.mxu0 0.0
  %829 = vmatprep.subr.mxu0 0.0
  %830 = vmatpush1.msra.mxu0 0.0
  %831 = vmatprep.subr.mxu0 0.0
  %832 = vmatpush1.msra.mxu0 0.0
  %833 = vmatprep.subr.mxu0 0.0
  %834 = vmatpush1.msra.mxu0 0.0
  %835 = vmatprep.subr.mxu0 0.0
  %836 = vmatpush1.msra.mxu0 0.0
  %837 = vmatprep.subr.mxu0 0.0
  %838 = vmatpush1.msra.mxu0 0.0
  %839 = vmatprep.subr.mxu0 0.0
  %840 = vmatpush1.msra.mxu0 0.0
  %841 = vmatprep.subr.mxu0 0.0
  %842 = vmatpush1.msra.mxu0 0.0
  %843 = vmatprep.subr.mxu0 0.0
  %844 = vmatpush1.msra.mxu0 0.0
  %845 = vmatprep.subr.mxu0 0.0
  %846 = vmatpush1.msra.mxu0 0.0
  %847 = vmatprep.subr.mxu0 0.0
  %848 = vmatpush1.msra.mxu0 %v182
  %849 = vmatprep.subr.mxu0 0.0
  %850 = vmatpush1.msra.mxu0 %v181
  %851 = vmatprep.subr.mxu0 0.0
  %852 = vmatpush1.msra.mxu0 %v180
  %853 = vmatprep.subr.mxu0 0.0
  %854 = vmatpush1.msra.mxu0 %v179
  %855 = vmatprep.subr.mxu0 0.0
  %856 = vmatpush2.msra.mxu0 0.0
  %857 = vmatprep.subr.mxu0 0.0
  %858 = vmatpush2.msra.mxu0 0.0
  %859 = vmatprep.subr.mxu0 0.0
  %860 = vmatpush2.msra.mxu0 0.0
  %861 = vmatprep.subr.mxu0 0.0
  %862 = vmatpush2.msra.mxu0 0.0
  %863 = vmatprep.subr.mxu0 0.0
  %864 = vmatpush2.msra.mxu0 0.0
  %865 = vmatprep.subr.mxu0 0.0
  %866 = vmatpush2.msra.mxu0 0.0
  %867 = vmatprep.subr.mxu0 0.0
  %868 = vmatpush2.msra.mxu0 0.0
  %869 = vmatprep.subr.mxu0 0.0
  %870 = vmatpush2.msra.mxu0 0.0
  %871 = vmatprep.subr.mxu0 0.0
  %872 = vmatpush2.msra.mxu0 0.0
  %873 = vmatprep.subr.mxu0 0.0
  %874 = vmatpush2.msra.mxu0 0.0
  %875 = vmatprep.subr.mxu0 0.0
  %876 = vmatpush2.msra.mxu0 0.0
  %877 = vmatprep.subr.mxu0 0.0
  %878 = vmatpush2.msra.mxu0 0.0
  %879 = vmatprep.subr.mxu0 0.0
  %880 = vmatpush2.msra.mxu0 0.0
  %881 = vmatprep.subr.mxu0 0.0
  %882 = vmatpush2.msra.mxu0 0.0
  %883 = vmatprep.subr.mxu0 0.0
  %884 = vmatpush2.msra.mxu0 0.0
  %885 = vmatprep.subr.mxu0 0.0
  %886 = vmatpush2.msra.mxu0 0.0
  %887 = vmatprep.mubr.f32.mxu0 0.0
  %888 = vmatmul.mubr.f32.gmra.mxu0 %v821
  %v889 = vpop.f32.mrf.mxu0
  %v890 = vadd.f32 0.0, %v889
  %v891 = vpop.f32.mrf.mxu0
  %892 = vdwg.mxu0
  %v893 = vadd.f32 %v820, %v890
  %v894 = vxor.u32 %v893, 2147483648
  %v895 = vmul.f32 %v894, 1.442695
  %v896 = vpow.pop %v895
  %v897 = vadd.f32 %v896, 1.0
  %v898 = vrcp.pop %v897
  %v899 = vmul.f32 1.0, %v898
  %v900 = vtanh.pop %v893
  %v901 = vmul.f32 %v899, %v806
  %903 = vrot.lane.b32.xlu0 %v900, 32
  %v904 = vpop.permute.xlu0 %903
  %v906 = vmul.f32 %v899, %v904
  %908 = vrot.lane.b32.xlu0 %v906, 32
  %v909 = vpop.permute.xlu0 %908
  %v911 = vadd.f32 %v901, %v909
  %v912 = vtanh.pop %v911
  %914 = vrot.lane.b32.xlu0 %v912, 32
  %v915 = vpop.permute.xlu0 %914
  %v917 = vmul.f32 %v899, %v915
  %919 = vrot.lane.b32.xlu0 %v917, 64
  %v920 = vpop.permute.xlu0 %919
  %s922 = scalar_lea.vmem %s4, 48
  %923 = vst.msk [vmem:[%s922] sm:$0xff] %vm186, %v920
  %s924 = scalar_lea.vmem [#allocation2], 56
  %v925 = vld [vmem:[%s924] sm:$0xff]
  %v926 = vsel %vm186, %v920, 0
  %928 = vmatprep.subr.mxu0 0.0
  %929 = vmatpush1.msra.mxu0 0.0
  %930 = vmatprep.subr.mxu0 0.0
  %931 = vmatpush1.msra.mxu0 0.0
  %932 = vmatprep.subr.mxu0 0.0
  %933 = vmatpush1.msra.mxu0 0.0
  %934 = vmatprep.subr.mxu0 0.0
  %935 = vmatpush1.msra.mxu0 0.0
  %936 = vmatprep.subr.mxu0 0.0
  %937 = vmatpush1.msra.mxu0 0.0
  %938 = vmatprep.subr.mxu0 0.0
  %939 = vmatpush1.msra.mxu0 0.0
  %940 = vmatprep.subr.mxu0 0.0
  %941 = vmatpush1.msra.mxu0 0.0
  %942 = vmatprep.subr.mxu0 0.0
  %943 = vmatpush1.msra.mxu0 0.0
  %944 = vmatprep.subr.mxu0 0.0
  %945 = vmatpush1.msra.mxu0 0.0
  %946 = vmatprep.subr.mxu0 0.0
  %947 = vmatpush1.msra.mxu0 0.0
  %948 = vmatprep.subr.mxu0 0.0
  %949 = vmatpush1.msra.mxu0 0.0
  %950 = vmatprep.subr.mxu0 0.0
  %951 = vmatpush1.msra.mxu0 0.0
  %952 = vmatprep.subr.mxu0 0.0
  %953 = vmatpush1.msra.mxu0 %v182
  %954 = vmatprep.subr.mxu0 0.0
  %955 = vmatpush1.msra.mxu0 %v181
  %956 = vmatprep.subr.mxu0 0.0
  %957 = vmatpush1.msra.mxu0 %v180
  %958 = vmatprep.subr.mxu0 0.0
  %959 = vmatpush1.msra.mxu0 %v179
  %960 = vmatprep.subr.mxu0 0.0
  %961 = vmatpush2.msra.mxu0 0.0
  %962 = vmatprep.subr.mxu0 0.0
  %963 = vmatpush2.msra.mxu0 0.0
  %964 = vmatprep.subr.mxu0 0.0
  %965 = vmatpush2.msra.mxu0 0.0
  %966 = vmatprep.subr.mxu0 0.0
  %967 = vmatpush2.msra.mxu0 0.0
  %968 = vmatprep.subr.mxu0 0.0
  %969 = vmatpush2.msra.mxu0 0.0
  %970 = vmatprep.subr.mxu0 0.0
  %971 = vmatpush2.msra.mxu0 0.0
  %972 = vmatprep.subr.mxu0 0.0
  %973 = vmatpush2.msra.mxu0 0.0
  %974 = vmatprep.subr.mxu0 0.0
  %975 = vmatpush2.msra.mxu0 0.0
  %976 = vmatprep.subr.mxu0 0.0
  %977 = vmatpush2.msra.mxu0 0.0
  %978 = vmatprep.subr.mxu0 0.0
  %979 = vmatpush2.msra.mxu0 0.0
  %980 = vmatprep.subr.mxu0 0.0
  %981 = vmatpush2.msra.mxu0 0.0
  %982 = vmatprep.subr.mxu0 0.0
  %983 = vmatpush2.msra.mxu0 0.0
  %984 = vmatprep.subr.mxu0 0.0
  %985 = vmatpush2.msra.mxu0 0.0
  %986 = vmatprep.subr.mxu0 0.0
  %987 = vmatpush2.msra.mxu0 0.0
  %988 = vmatprep.subr.mxu0 0.0
  %989 = vmatpush2.msra.mxu0 0.0
  %990 = vmatprep.subr.mxu0 0.0
  %991 = vmatpush2.msra.mxu0 0.0
  %992 = vmatprep.mubr.f32.mxu0 0.0
  %993 = vmatmul.mubr.f32.gmra.mxu0 %v926
  %v994 = vpop.f32.mrf.mxu0
  %v995 = vadd.f32 0.0, %v994
  %v996 = vpop.f32.mrf.mxu0
  %997 = vdwg.mxu0
  %v998 = vadd.f32 %v925, %v995
  %v999 = vxor.u32 %v998, 2147483648
  %v1000 = vmul.f32 %v999, 1.442695
  %v1001 = vpow.pop %v1000
  %v1002 = vadd.f32 %v1001, 1.0
  %v1003 = vrcp.pop %v1002
  %v1004 = vmul.f32 1.0, %v1003
  %v1005 = vtanh.pop %v998
  %v1006 = vmul.f32 %v1004, %v911
  %1008 = vrot.lane.b32.xlu0 %v1005, 32
  %v1009 = vpop.permute.xlu0 %1008
  %v1011 = vmul.f32 %v1004, %v1009
  %1013 = vrot.lane.b32.xlu0 %v1011, 32
  %v1014 = vpop.permute.xlu0 %1013
  %v1016 = vadd.f32 %v1006, %v1014
  %v1017 = vtanh.pop %v1016
  %1019 = vrot.lane.b32.xlu0 %v1017, 32
  %v1020 = vpop.permute.xlu0 %1019
  %v1022 = vmul.f32 %v1004, %v1020
  %1024 = vrot.lane.b32.xlu0 %v1022, 64
  %v1025 = vpop.permute.xlu0 %1024
  %s1027 = scalar_lea.vmem %s4, 56
  %1028 = vst.msk [vmem:[%s1027] sm:$0xff] %vm186, %v1025
  %1029 = vst.msk [vmem:[#allocation3] sm:$0xff] %vm186, %v1025
  %1031 = vrot.lane.b32.xlu0 %v1016, 96
  %v1032 = vpop.permute.xlu0 %1031
  %1034 = vst.msk [vmem:[#allocation4] sm:$0xff] %vm186, %v1032
  // Predicated region
  $region22: #{lstm_model_forward.2} parent=0 // pred_check
    _
  $region23: #{lstm_model_forward.2} parent=0 // pred_check_branch
    %1036 = sbr.rel (0) target = $region25
  $region24: #{lstm_model_forward.2} parent=0 // pred_region
    _
  $region25: #{lstm_model_forward.2} parent=0 // pred_fallthru
    _
  // Predicated region
  $region26: #{lstm_model_forward.2} parent=0 // pred_check
    _
  $region27: #{lstm_model_forward.2} parent=0 // pred_check_branch
    %1038 = sbr.rel (0) target = $region29
  $region28: #{lstm_model_forward.2} parent=0 // pred_region
    _
  $region29: #{lstm_model_forward.2} parent=0 // pred_fallthru
    _

// kernel: lstm_model_forward.3
$region0: #{lstm_model_forward.3}
  #allocation0 [shape = 'u32[]', space=smem, size = 0x4, offset = 0x4, fixed_abs, tag = 'smem constant byte address 0x4 - core index']
  #allocation1 [shape = 'u32[144,128]{1,0:T(1,128)}', space=vmem, size = 0x12000, scoped, tag = 'internal scratch']
  #allocation2 [shape = 'f32[64,128]{1,0:T(8,128)}', space=vmem, size = 0x8000, scoped, tag = 'scratch operand']
  #allocation3 [shape = 'f32[8,32]{1,0:T(8,128)}', space=vmem, size = 0x1000, scoped, tag = 'scratch operand']
  #allocation4 [shape = 'f32[8,32]{1,0:T(8,128)}', space=vmem, size = 0x1000, scoped, tag = 'scratch operand']
  %s0 = inlined_call_operand.vmem [shape: f32[64,32], index: 0, kind: input, shape index: {}]
  %s1 = inlined_call_operand.vmem [shape: f32[32,128], index: 1, kind: input, shape index: {}]
  %s2 = inlined_call_operand.vmem [shape: f32[1,128], index: 2, kind: input, shape index: {}]
  %s3 = inlined_call_operand.vmem [shape: f32[32,128], index: 3, kind: input, shape index: {}]
  %s4 = inlined_call_operand.vmem [shape: f32[32,4], index: 4, kind: input, shape index: {}]
  %s5 = inlined_call_operand.vmem [shape: f32[1,4], index: 5, kind: input, shape index: {}]
  %s6 = inlined_call_operand.vmem [shape: f32[8,4], index: 6, kind: output, shape index: {}]
  %s7 = sld [smem:[#allocation0]]
  $region42: #{lstm_model_forward.3} parent=0
    _
  %s9 = ssub.s32 1, %s7
  %s10 = scalar_select 0, %s9, %s7
  // Predicated region
  $region2: #{lstm_model_forward.3} parent=0 // pred_check
    _
  $region3: #{lstm_model_forward.3} parent=0 // pred_check_branch
    %12 = sbr.rel (0) target = $region5
  $region4: #{lstm_model_forward.3} parent=0 // pred_region
    _
  $region5: #{lstm_model_forward.3} parent=0 // pred_fallthru
    _
  // Predicated region
  $region6: #{lstm_model_forward.3} parent=0 // pred_check
    _
  $region7: #{lstm_model_forward.3} parent=0 // pred_check_branch
    %14 = sbr.rel (0) target = $region9
  $region8: #{lstm_model_forward.3} parent=0 // pred_region
    _
  $region9: #{lstm_model_forward.3} parent=0 // pred_fallthru
    _
  // Predicated region
  $region10: #{lstm_model_forward.3} parent=0 // pred_check
    _
  $region11: #{lstm_model_forward.3} parent=0 // pred_check_branch
    %16 = sbr.rel (0) target = $region13
  $region12: #{lstm_model_forward.3} parent=0 // pred_region
    _
  $region13: #{lstm_model_forward.3} parent=0 // pred_fallthru
    _
  // Predicated region
  $region14: #{lstm_model_forward.3} parent=0 // pred_check
    _
  $region15: #{lstm_model_forward.3} parent=0 // pred_check_branch
    %18 = sbr.rel (0) target = $region17
  $region16: #{lstm_model_forward.3} parent=0 // pred_region
    _
  $region17: #{lstm_model_forward.3} parent=0 // pred_fallthru
    _
  // Predicated region
  $region18: #{lstm_model_forward.3} parent=0 // pred_check
    _
  $region19: #{lstm_model_forward.3} parent=0 // pred_check_branch
    %20 = sbr.rel (0) target = $region21
  $region20: #{lstm_model_forward.3} parent=0 // pred_region
    _
  $region21: #{lstm_model_forward.3} parent=0 // pred_fallthru
    _
  // Predicated region
  $region22: #{lstm_model_forward.3} parent=0 // pred_check
    _
  $region23: #{lstm_model_forward.3} parent=0 // pred_check_branch
    %22 = sbr.rel (0) target = $region25
  $region24: #{lstm_model_forward.3} parent=0 // pred_region
    _
  $region25: #{lstm_model_forward.3} parent=0 // pred_fallthru
    _
  %p23 = scmp.eq.s32.totalorder 0, 0
  // Predicated region
  $region26: #{lstm_model_forward.3} parent=0 // pred_check
    %p24 = pneg %p23
  $region27: #{lstm_model_forward.3} parent=0 // pred_check_branch
    %26 = sbr.rel (%p24) target = $region29
  $region28: #{lstm_model_forward.3} parent=0 // pred_region
    %vm27 = vcmask 261120
    %28 = vst.msk [vmem:[#allocation3] sm:$0xff] %vm27, 0.0
    %29 = vst.msk [vmem:[#allocation4] sm:$0xff] %vm27, 0.0
  $region29: #{lstm_model_forward.3} parent=0 // pred_fallthru
    _
  %v30 = vld [vmem:[%s0] sm:$0xff]
  %v31 = vld [vmem:[%s0 + $0x8] sm:$0xff]
  %v32 = vld [vmem:[%s0 + $0x10] sm:$0xff]
  %v33 = vld [vmem:[%s0 + $0x18] sm:$0xff]
  %v34 = vld [vmem:[%s0 + $0x20] sm:$0xff]
  %v35 = vld [vmem:[%s0 + $0x28] sm:$0xff]
  %v36 = vld [vmem:[%s0 + $0x30] sm:$0xff]
  %v37 = vld [vmem:[%s0 + $0x38] sm:$0xff]
  %v38 = vld [vmem:[%s1] sm:$0xff]
  %v39 = vld [vmem:[%s1 + $0x8] sm:$0xff]
  %v40 = vld [vmem:[%s1 + $0x10] sm:$0xff]
  %v41 = vld [vmem:[%s1 + $0x18] sm:$0xff]
  %v42 = vld [vmem:[%s2] sm:$0x1]
  %v44 = vlaneseq
  %v45 = vshrl.u32 %v44, 7
  %v46 = vsub.s32 0, %v45
  %v47 = vrot.slane %v42, %v46
  %vm49 = vcmask 261120
  %v51 = vsel %vm49, %v30, 0
  %v54 = vsel %vm49, %v31, 0
  %v57 = vsel %vm49, %v32, 0
  %v60 = vsel %vm49, %v33, 0
  %v63 = vsel %vm49, %v34, 0
  %v66 = vsel %vm49, %v35, 0
  %v69 = vsel %vm49, %v36, 0
  %v72 = vsel %vm49, %v37, 0
  %74 = vmatprep.subr.mxu0 0.0
  %75 = vmatpush1.msra.mxu0 0.0
  %76 = vmatprep.subr.mxu0 0.0
  %77 = vmatpush1.msra.mxu0 0.0
  %78 = vmatprep.subr.mxu0 0.0
  %79 = vmatpush1.msra.mxu0 0.0
  %80 = vmatprep.subr.mxu0 0.0
  %81 = vmatpush1.msra.mxu0 0.0
  %82 = vmatprep.subr.mxu0 0.0
  %83 = vmatpush1.msra.mxu0 0.0
  %84 = vmatprep.subr.mxu0 0.0
  %85 = vmatpush1.msra.mxu0 0.0
  %86 = vmatprep.subr.mxu0 0.0
  %87 = vmatpush1.msra.mxu0 0.0
  %88 = vmatprep.subr.mxu0 0.0
  %89 = vmatpush1.msra.mxu0 0.0
  %90 = vmatprep.subr.mxu0 0.0
  %91 = vmatpush1.msra.mxu0 0.0
  %92 = vmatprep.subr.mxu0 0.0
  %93 = vmatpush1.msra.mxu0 0.0
  %94 = vmatprep.subr.mxu0 0.0
  %95 = vmatpush1.msra.mxu0 0.0
  %96 = vmatprep.subr.mxu0 0.0
  %97 = vmatpush1.msra.mxu0 0.0
  %98 = vmatprep.subr.mxu0 0.0
  %99 = vmatpush1.msra.mxu0 %v41
  %100 = vmatprep.subr.mxu0 0.0
  %101 = vmatpush1.msra.mxu0 %v40
  %102 = vmatprep.subr.mxu0 0.0
  %103 = vmatpush1.msra.mxu0 %v39
  %104 = vmatprep.subr.mxu0 0.0
  %105 = vmatpush1.msra.mxu0 %v38
  %106 = vmatprep.subr.mxu0 0.0
  %107 = vmatpush2.msra.mxu0 0.0
  %108 = vmatprep.subr.mxu0 0.0
  %109 = vmatpush2.msra.mxu0 0.0
  %110 = vmatprep.subr.mxu0 0.0
  %111 = vmatpush2.msra.mxu0 0.0
  %112 = vmatprep.subr.mxu0 0.0
  %113 = vmatpush2.msra.mxu0 0.0
  %114 = vmatprep.subr.mxu0 0.0
  %115 = vmatpush2.msra.mxu0 0.0
  %116 = vmatprep.subr.mxu0 0.0
  %117 = vmatpush2.msra.mxu0 0.0
  %118 = vmatprep.subr.mxu0 0.0
  %119 = vmatpush2.msra.mxu0 0.0
  %120 = vmatprep.subr.mxu0 0.0
  %121 = vmatpush2.msra.mxu0 0.0
  %122 = vmatprep.subr.mxu0 0.0
  %123 = vmatpush2.msra.mxu0 0.0
  %124 = vmatprep.subr.mxu0 0.0
  %125 = vmatpush2.msra.mxu0 0.0
  %126 = vmatprep.subr.mxu0 0.0
  %127 = vmatpush2.msra.mxu0 0.0
  %128 = vmatprep.subr.mxu0 0.0
  %129 = vmatpush2.msra.mxu0 0.0
  %130 = vmatprep.subr.mxu0 0.0
  %131 = vmatpush2.msra.mxu0 0.0
  %132 = vmatprep.subr.mxu0 0.0
  %133 = vmatpush2.msra.mxu0 0.0
  %134 = vmatprep.subr.mxu0 0.0
  %135 = vmatpush2.msra.mxu0 0.0
  %136 = vmatprep.subr.mxu0 0.0
  %137 = vmatpush2.msra.mxu0 0.0
  %138 = vmatprep.mubr.f32.mxu0 0.0
  %139 = vmatmul.mubr.f32.gmra.mxu0 %v51
  %v140 = vpop.f32.mrf.mxu0
  %v141 = vadd.f32 %v47, %v140
  %v142 = vpop.f32.mrf.mxu0
  %143 = vmatprep.mubr.f32.mxu0 0.0
  %144 = vmatmul.mubr.f32.gmra.mxu0 %v54
  %v145 = vpop.f32.mrf.mxu0
  %v146 = vadd.f32 %v47, %v145
  %v147 = vpop.f32.mrf.mxu0
  %148 = vmatprep.mubr.f32.mxu0 0.0
  %149 = vmatmul.mubr.f32.gmra.mxu0 %v57
  %v150 = vpop.f32.mrf.mxu0
  %v151 = vadd.f32 %v47, %v150
  %v152 = vpop.f32.mrf.mxu0
  %153 = vmatprep.mubr.f32.mxu0 0.0
  %154 = vmatmul.mubr.f32.gmra.mxu0 %v60
  %v155 = vpop.f32.mrf.mxu0
  %v156 = vadd.f32 %v47, %v155
  %v157 = vpop.f32.mrf.mxu0
  %158 = vmatprep.mubr.f32.mxu0 0.0
  %159 = vmatmul.mubr.f32.gmra.mxu0 %v63
  %v160 = vpop.f32.mrf.mxu0
  %v161 = vadd.f32 %v47, %v160
  %v162 = vpop.f32.mrf.mxu0
  %163 = vmatprep.mubr.f32.mxu0 0.0
  %164 = vmatmul.mubr.f32.gmra.mxu0 %v66
  %v165 = vpop.f32.mrf.mxu0
  %v166 = vadd.f32 %v47, %v165
  %v167 = vpop.f32.mrf.mxu0
  %168 = vmatprep.mubr.f32.mxu0 0.0
  %169 = vmatmul.mubr.f32.gmra.mxu0 %v69
  %v170 = vpop.f32.mrf.mxu0
  %v171 = vadd.f32 %v47, %v170
  %v172 = vpop.f32.mrf.mxu0
  %173 = vmatprep.mubr.f32.mxu0 0.0
  %174 = vmatmul.mubr.f32.gmra.mxu0 %v72
  %v175 = vpop.f32.mrf.mxu0
  %v176 = vadd.f32 %v47, %v175
  %v177 = vpop.f32.mrf.mxu0
  %178 = vdwg.mxu0
  %179 = vst [vmem:[#allocation2] sm:$0xff] %v141
  %180 = vst [vmem:[#allocation2 + $0x8] sm:$0xff] %v146
  %181 = vst [vmem:[#allocation2 + $0x10] sm:$0xff] %v151
  %182 = vst [vmem:[#allocation2 + $0x18] sm:$0xff] %v156
  %183 = vst [vmem:[#allocation2 + $0x20] sm:$0xff] %v161
  %184 = vst [vmem:[#allocation2 + $0x28] sm:$0xff] %v166
  %185 = vst [vmem:[#allocation2 + $0x30] sm:$0xff] %v171
  %186 = vst [vmem:[#allocation2 + $0x38] sm:$0xff] %v176
  %v187 = vld [vmem:[%s3] sm:$0xff]
  %v188 = vld [vmem:[%s3 + $0x8] sm:$0xff]
  %v189 = vld [vmem:[%s3 + $0x10] sm:$0xff]
  %v190 = vld [vmem:[%s3 + $0x18] sm:$0xff]
  %v191 = vld [vmem:[#allocation3] sm:$0xff]
  %v192 = vld [vmem:[#allocation4] sm:$0xff]
  %v193 = vld [vmem:[#allocation2] sm:$0xff]
  %v195 = vsel %vm49, %v191, 0
  %197 = vmatprep.subr.mxu0 0.0
  %198 = vmatpush1.msra.mxu0 0.0
  %199 = vmatprep.subr.mxu0 0.0
  %200 = vmatpush1.msra.mxu0 0.0
  %201 = vmatprep.subr.mxu0 0.0
  %202 = vmatpush1.msra.mxu0 0.0
  %203 = vmatprep.subr.mxu0 0.0
  %204 = vmatpush1.msra.mxu0 0.0
  %205 = vmatprep.subr.mxu0 0.0
  %206 = vmatpush1.msra.mxu0 0.0
  %207 = vmatprep.subr.mxu0 0.0
  %208 = vmatpush1.msra.mxu0 0.0
  %209 = vmatprep.subr.mxu0 0.0
  %210 = vmatpush1.msra.mxu0 0.0
  %211 = vmatprep.subr.mxu0 0.0
  %212 = vmatpush1.msra.mxu0 0.0
  %213 = vmatprep.subr.mxu0 0.0
  %214 = vmatpush1.msra.mxu0 0.0
  %215 = vmatprep.subr.mxu0 0.0
  %216 = vmatpush1.msra.mxu0 0.0
  %217 = vmatprep.subr.mxu0 0.0
  %218 = vmatpush1.msra.mxu0 0.0
  %219 = vmatprep.subr.mxu0 0.0
  %220 = vmatpush1.msra.mxu0 0.0
  %221 = vmatprep.subr.mxu0 0.0
  %222 = vmatpush1.msra.mxu0 %v190
  %223 = vmatprep.subr.mxu0 0.0
  %224 = vmatpush1.msra.mxu0 %v189
  %225 = vmatprep.subr.mxu0 0.0
  %226 = vmatpush1.msra.mxu0 %v188
  %227 = vmatprep.subr.mxu0 0.0
  %228 = vmatpush1.msra.mxu0 %v187
  %229 = vmatprep.subr.mxu0 0.0
  %230 = vmatpush2.msra.mxu0 0.0
  %231 = vmatprep.subr.mxu0 0.0
  %232 = vmatpush2.msra.mxu0 0.0
  %233 = vmatprep.subr.mxu0 0.0
  %234 = vmatpush2.msra.mxu0 0.0
  %235 = vmatprep.subr.mxu0 0.0
  %236 = vmatpush2.msra.mxu0 0.0
  %237 = vmatprep.subr.mxu0 0.0
  %238 = vmatpush2.msra.mxu0 0.0
  %239 = vmatprep.subr.mxu0 0.0
  %240 = vmatpush2.msra.mxu0 0.0
  %241 = vmatprep.subr.mxu0 0.0
  %242 = vmatpush2.msra.mxu0 0.0
  %243 = vmatprep.subr.mxu0 0.0
  %244 = vmatpush2.msra.mxu0 0.0
  %245 = vmatprep.subr.mxu0 0.0
  %246 = vmatpush2.msra.mxu0 0.0
  %247 = vmatprep.subr.mxu0 0.0
  %248 = vmatpush2.msra.mxu0 0.0
  %249 = vmatprep.subr.mxu0 0.0
  %250 = vmatpush2.msra.mxu0 0.0
  %251 = vmatprep.subr.mxu0 0.0
  %252 = vmatpush2.msra.mxu0 0.0
  %253 = vmatprep.subr.mxu0 0.0
  %254 = vmatpush2.msra.mxu0 0.0
  %255 = vmatprep.subr.mxu0 0.0
  %256 = vmatpush2.msra.mxu0 0.0
  %257 = vmatprep.subr.mxu0 0.0
  %258 = vmatpush2.msra.mxu0 0.0
  %259 = vmatprep.subr.mxu0 0.0
  %260 = vmatpush2.msra.mxu0 0.0
  %261 = vmatprep.mubr.f32.mxu0 0.0
  %262 = vmatmul.mubr.f32.gmra.mxu0 %v195
  %v263 = vpop.f32.mrf.mxu0
  %v264 = vadd.f32 0.0, %v263
  %v265 = vpop.f32.mrf.mxu0
  %266 = vdwg.mxu0
  %v267 = vadd.f32 %v193, %v264
  %v268 = vxor.u32 %v267, 2147483648
  %v269 = vmul.f32 %v268, 1.442695
  %v270 = vpow.pop %v269
  %v271 = vadd.f32 %v270, 1.0
  %v272 = vrcp.pop %v271
  %v273 = vmul.f32 1.0, %v272
  %v274 = vtanh.pop %v267
  %276 = vrot.lane.b32.xlu0 %v192, 32
  %v277 = vpop.permute.xlu0 %276
  %v279 = vmul.f32 %v273, %v277
  %281 = vrot.lane.b32.xlu0 %v274, 32
  %v282 = vpop.permute.xlu0 %281
  %v284 = vmul.f32 %v273, %v282
  %286 = vrot.lane.b32.xlu0 %v284, 32
  %v287 = vpop.permute.xlu0 %286
  %v289 = vadd.f32 %v279, %v287
  %v290 = vtanh.pop %v289
  %292 = vrot.lane.b32.xlu0 %v290, 32
  %v293 = vpop.permute.xlu0 %292
  %v295 = vmul.f32 %v273, %v293
  %s296 = scalar_lea.vmem [#allocation2], 8
  %v297 = vld [vmem:[%s296] sm:$0xff]
  %299 = vrot.lane.b32.xlu0 %v295, 64
  %v300 = vpop.permute.xlu0 %299
  %v301 = vsel %vm49, %v300, 0
  %303 = vmatprep.subr.mxu0 0.0
  %304 = vmatpush1.msra.mxu0 0.0
  %305 = vmatprep.subr.mxu0 0.0
  %306 = vmatpush1.msra.mxu0 0.0
  %307 = vmatprep.subr.mxu0 0.0
  %308 = vmatpush1.msra.mxu0 0.0
  %309 = vmatprep.subr.mxu0 0.0
  %310 = vmatpush1.msra.mxu0 0.0
  %311 = vmatprep.subr.mxu0 0.0
  %312 = vmatpush1.msra.mxu0 0.0
  %313 = vmatprep.subr.mxu0 0.0
  %314 = vmatpush1.msra.mxu0 0.0
  %315 = vmatprep.subr.mxu0 0.0
  %316 = vmatpush1.msra.mxu0 0.0
  %317 = vmatprep.subr.mxu0 0.0
  %318 = vmatpush1.msra.mxu0 0.0
  %319 = vmatprep.subr.mxu0 0.0
  %320 = vmatpush1.msra.mxu0 0.0
  %321 = vmatprep.subr.mxu0 0.0
  %322 = vmatpush1.msra.mxu0 0.0
  %323 = vmatprep.subr.mxu0 0.0
  %324 = vmatpush1.msra.mxu0 0.0
  %325 = vmatprep.subr.mxu0 0.0
  %326 = vmatpush1.msra.mxu0 0.0
  %327 = vmatprep.subr.mxu0 0.0
  %328 = vmatpush1.msra.mxu0 %v190
  %329 = vmatprep.subr.mxu0 0.0
  %330 = vmatpush1.msra.mxu0 %v189
  %331 = vmatprep.subr.mxu0 0.0
  %332 = vmatpush1.msra.mxu0 %v188
  %333 = vmatprep.subr.mxu0 0.0
  %334 = vmatpush1.msra.mxu0 %v187
  %335 = vmatprep.subr.mxu0 0.0
  %336 = vmatpush2.msra.mxu0 0.0
  %337 = vmatprep.subr.mxu0 0.0
  %338 = vmatpush2.msra.mxu0 0.0
  %339 = vmatprep.subr.mxu0 0.0
  %340 = vmatpush2.msra.mxu0 0.0
  %341 = vmatprep.subr.mxu0 0.0
  %342 = vmatpush2.msra.mxu0 0.0
  %343 = vmatprep.subr.mxu0 0.0
  %344 = vmatpush2.msra.mxu0 0.0
  %345 = vmatprep.subr.mxu0 0.0
  %346 = vmatpush2.msra.mxu0 0.0
  %347 = vmatprep.subr.mxu0 0.0
  %348 = vmatpush2.msra.mxu0 0.0
  %349 = vmatprep.subr.mxu0 0.0
  %350 = vmatpush2.msra.mxu0 0.0
  %351 = vmatprep.subr.mxu0 0.0
  %352 = vmatpush2.msra.mxu0 0.0
  %353 = vmatprep.subr.mxu0 0.0
  %354 = vmatpush2.msra.mxu0 0.0
  %355 = vmatprep.subr.mxu0 0.0
  %356 = vmatpush2.msra.mxu0 0.0
  %357 = vmatprep.subr.mxu0 0.0
  %358 = vmatpush2.msra.mxu0 0.0
  %359 = vmatprep.subr.mxu0 0.0
  %360 = vmatpush2.msra.mxu0 0.0
  %361 = vmatprep.subr.mxu0 0.0
  %362 = vmatpush2.msra.mxu0 0.0
  %363 = vmatprep.subr.mxu0 0.0
  %364 = vmatpush2.msra.mxu0 0.0
  %365 = vmatprep.subr.mxu0 0.0
  %366 = vmatpush2.msra.mxu0 0.0
  %367 = vmatprep.mubr.f32.mxu0 0.0
  %368 = vmatmul.mubr.f32.gmra.mxu0 %v301
  %v369 = vpop.f32.mrf.mxu0
  %v370 = vadd.f32 0.0, %v369
  %v371 = vpop.f32.mrf.mxu0
  %372 = vdwg.mxu0
  %v373 = vadd.f32 %v297, %v370
  %v374 = vxor.u32 %v373, 2147483648
  %v375 = vmul.f32 %v374, 1.442695
  %v376 = vpow.pop %v375
  %v377 = vadd.f32 %v376, 1.0
  %v378 = vrcp.pop %v377
  %v379 = vmul.f32 1.0, %v378
  %v380 = vtanh.pop %v373
  %v381 = vmul.f32 %v379, %v289
  %383 = vrot.lane.b32.xlu0 %v380, 32
  %v384 = vpop.permute.xlu0 %383
  %v386 = vmul.f32 %v379, %v384
  %388 = vrot.lane.b32.xlu0 %v386, 32
  %v389 = vpop.permute.xlu0 %388
  %v391 = vadd.f32 %v381, %v389
  %v392 = vtanh.pop %v391
  %394 = vrot.lane.b32.xlu0 %v392, 32
  %v395 = vpop.permute.xlu0 %394
  %v397 = vmul.f32 %v379, %v395
  %s398 = scalar_lea.vmem [#allocation2], 16
  %v399 = vld [vmem:[%s398] sm:$0xff]
  %401 = vrot.lane.b32.xlu0 %v397, 64
  %v402 = vpop.permute.xlu0 %401
  %v403 = vsel %vm49, %v402, 0
  %405 = vmatprep.subr.mxu0 0.0
  %406 = vmatpush1.msra.mxu0 0.0
  %407 = vmatprep.subr.mxu0 0.0
  %408 = vmatpush1.msra.mxu0 0.0
  %409 = vmatprep.subr.mxu0 0.0
  %410 = vmatpush1.msra.mxu0 0.0
  %411 = vmatprep.subr.mxu0 0.0
  %412 = vmatpush1.msra.mxu0 0.0
  %413 = vmatprep.subr.mxu0 0.0
  %414 = vmatpush1.msra.mxu0 0.0
  %415 = vmatprep.subr.mxu0 0.0
  %416 = vmatpush1.msra.mxu0 0.0
  %417 = vmatprep.subr.mxu0 0.0
  %418 = vmatpush1.msra.mxu0 0.0
  %419 = vmatprep.subr.mxu0 0.0
  %420 = vmatpush1.msra.mxu0 0.0
  %421 = vmatprep.subr.mxu0 0.0
  %422 = vmatpush1.msra.mxu0 0.0
  %423 = vmatprep.subr.mxu0 0.0
  %424 = vmatpush1.msra.mxu0 0.0
  %425 = vmatprep.subr.mxu0 0.0
  %426 = vmatpush1.msra.mxu0 0.0
  %427 = vmatprep.subr.mxu0 0.0
  %428 = vmatpush1.msra.mxu0 0.0
  %429 = vmatprep.subr.mxu0 0.0
  %430 = vmatpush1.msra.mxu0 %v190
  %431 = vmatprep.subr.mxu0 0.0
  %432 = vmatpush1.msra.mxu0 %v189
  %433 = vmatprep.subr.mxu0 0.0
  %434 = vmatpush1.msra.mxu0 %v188
  %435 = vmatprep.subr.mxu0 0.0
  %436 = vmatpush1.msra.mxu0 %v187
  %437 = vmatprep.subr.mxu0 0.0
  %438 = vmatpush2.msra.mxu0 0.0
  %439 = vmatprep.subr.mxu0 0.0
  %440 = vmatpush2.msra.mxu0 0.0
  %441 = vmatprep.subr.mxu0 0.0
  %442 = vmatpush2.msra.mxu0 0.0
  %443 = vmatprep.subr.mxu0 0.0
  %444 = vmatpush2.msra.mxu0 0.0
  %445 = vmatprep.subr.mxu0 0.0
  %446 = vmatpush2.msra.mxu0 0.0
  %447 = vmatprep.subr.mxu0 0.0
  %448 = vmatpush2.msra.mxu0 0.0
  %449 = vmatprep.subr.mxu0 0.0
  %450 = vmatpush2.msra.mxu0 0.0
  %451 = vmatprep.subr.mxu0 0.0
  %452 = vmatpush2.msra.mxu0 0.0
  %453 = vmatprep.subr.mxu0 0.0
  %454 = vmatpush2.msra.mxu0 0.0
  %455 = vmatprep.subr.mxu0 0.0
  %456 = vmatpush2.msra.mxu0 0.0
  %457 = vmatprep.subr.mxu0 0.0
  %458 = vmatpush2.msra.mxu0 0.0
  %459 = vmatprep.subr.mxu0 0.0
  %460 = vmatpush2.msra.mxu0 0.0
  %461 = vmatprep.subr.mxu0 0.0
  %462 = vmatpush2.msra.mxu0 0.0
  %463 = vmatprep.subr.mxu0 0.0
  %464 = vmatpush2.msra.mxu0 0.0
  %465 = vmatprep.subr.mxu0 0.0
  %466 = vmatpush2.msra.mxu0 0.0
  %467 = vmatprep.subr.mxu0 0.0
  %468 = vmatpush2.msra.mxu0 0.0
  %469 = vmatprep.mubr.f32.mxu0 0.0
  %470 = vmatmul.mubr.f32.gmra.mxu0 %v403
  %v471 = vpop.f32.mrf.mxu0
  %v472 = vadd.f32 0.0, %v471
  %v473 = vpop.f32.mrf.mxu0
  %474 = vdwg.mxu0
  %v475 = vadd.f32 %v399, %v472
  %v476 = vxor.u32 %v475, 2147483648
  %v477 = vmul.f32 %v476, 1.442695
  %v478 = vpow.pop %v477
  %v479 = vadd.f32 %v478, 1.0
  %v480 = vrcp.pop %v479
  %v481 = vmul.f32 1.0, %v480
  %v482 = vtanh.pop %v475
  %v483 = vmul.f32 %v481, %v391
  %485 = vrot.lane.b32.xlu0 %v482, 32
  %v486 = vpop.permute.xlu0 %485
  %v488 = vmul.f32 %v481, %v486
  %490 = vrot.lane.b32.xlu0 %v488, 32
  %v491 = vpop.permute.xlu0 %490
  %v493 = vadd.f32 %v483, %v491
  %v494 = vtanh.pop %v493
  %496 = vrot.lane.b32.xlu0 %v494, 32
  %v497 = vpop.permute.xlu0 %496
  %v499 = vmul.f32 %v481, %v497
  %s500 = scalar_lea.vmem [#allocation2], 24
  %v501 = vld [vmem:[%s500] sm:$0xff]
  %503 = vrot.lane.b32.xlu0 %v499, 64
  %v504 = vpop.permute.xlu0 %503
  %v505 = vsel %vm49, %v504, 0
  %507 = vmatprep.subr.mxu0 0.0
  %508 = vmatpush1.msra.mxu0 0.0
  %509 = vmatprep.subr.mxu0 0.0
  %510 = vmatpush1.msra.mxu0 0.0
  %511 = vmatprep.subr.mxu0 0.0
  %512 = vmatpush1.msra.mxu0 0.0
  %513 = vmatprep.subr.mxu0 0.0
  %514 = vmatpush1.msra.mxu0 0.0
  %515 = vmatprep.subr.mxu0 0.0
  %516 = vmatpush1.msra.mxu0 0.0
  %517 = vmatprep.subr.mxu0 0.0
  %518 = vmatpush1.msra.mxu0 0.0
  %519 = vmatprep.subr.mxu0 0.0
  %520 = vmatpush1.msra.mxu0 0.0
  %521 = vmatprep.subr.mxu0 0.0
  %522 = vmatpush1.msra.mxu0 0.0
  %523 = vmatprep.subr.mxu0 0.0
  %524 = vmatpush1.msra.mxu0 0.0
  %525 = vmatprep.subr.mxu0 0.0
  %526 = vmatpush1.msra.mxu0 0.0
  %527 = vmatprep.subr.mxu0 0.0
  %528 = vmatpush1.msra.mxu0 0.0
  %529 = vmatprep.subr.mxu0 0.0
  %530 = vmatpush1.msra.mxu0 0.0
  %531 = vmatprep.subr.mxu0 0.0
  %532 = vmatpush1.msra.mxu0 %v190
  %533 = vmatprep.subr.mxu0 0.0
  %534 = vmatpush1.msra.mxu0 %v189
  %535 = vmatprep.subr.mxu0 0.0
  %536 = vmatpush1.msra.mxu0 %v188
  %537 = vmatprep.subr.mxu0 0.0
  %538 = vmatpush1.msra.mxu0 %v187
  %539 = vmatprep.subr.mxu0 0.0
  %540 = vmatpush2.msra.mxu0 0.0
  %541 = vmatprep.subr.mxu0 0.0
  %542 = vmatpush2.msra.mxu0 0.0
  %543 = vmatprep.subr.mxu0 0.0
  %544 = vmatpush2.msra.mxu0 0.0
  %545 = vmatprep.subr.mxu0 0.0
  %546 = vmatpush2.msra.mxu0 0.0
  %547 = vmatprep.subr.mxu0 0.0
  %548 = vmatpush2.msra.mxu0 0.0
  %549 = vmatprep.subr.mxu0 0.0
  %550 = vmatpush2.msra.mxu0 0.0
  %551 = vmatprep.subr.mxu0 0.0
  %552 = vmatpush2.msra.mxu0 0.0
  %553 = vmatprep.subr.mxu0 0.0
  %554 = vmatpush2.msra.mxu0 0.0
  %555 = vmatprep.subr.mxu0 0.0
  %556 = vmatpush2.msra.mxu0 0.0
  %557 = vmatprep.subr.mxu0 0.0
  %558 = vmatpush2.msra.mxu0 0.0
  %559 = vmatprep.subr.mxu0 0.0
  %560 = vmatpush2.msra.mxu0 0.0
  %561 = vmatprep.subr.mxu0 0.0
  %562 = vmatpush2.msra.mxu0 0.0
  %563 = vmatprep.subr.mxu0 0.0
  %564 = vmatpush2.msra.mxu0 0.0
  %565 = vmatprep.subr.mxu0 0.0
  %566 = vmatpush2.msra.mxu0 0.0
  %567 = vmatprep.subr.mxu0 0.0
  %568 = vmatpush2.msra.mxu0 0.0
  %569 = vmatprep.subr.mxu0 0.0
  %570 = vmatpush2.msra.mxu0 0.0
  %571 = vmatprep.mubr.f32.mxu0 0.0
  %572 = vmatmul.mubr.f32.gmra.mxu0 %v505
  %v573 = vpop.f32.mrf.mxu0
  %v574 = vadd.f32 0.0, %v573
  %v575 = vpop.f32.mrf.mxu0
  %576 = vdwg.mxu0
  %v577 = vadd.f32 %v501, %v574
  %v578 = vxor.u32 %v577, 2147483648
  %v579 = vmul.f32 %v578, 1.442695
  %v580 = vpow.pop %v579
  %v581 = vadd.f32 %v580, 1.0
  %v582 = vrcp.pop %v581
  %v583 = vmul.f32 1.0, %v582
  %v584 = vtanh.pop %v577
  %v585 = vmul.f32 %v583, %v493
  %587 = vrot.lane.b32.xlu0 %v584, 32
  %v588 = vpop.permute.xlu0 %587
  %v590 = vmul.f32 %v583, %v588
  %592 = vrot.lane.b32.xlu0 %v590, 32
  %v593 = vpop.permute.xlu0 %592
  %v595 = vadd.f32 %v585, %v593
  %v596 = vtanh.pop %v595
  %598 = vrot.lane.b32.xlu0 %v596, 32
  %v599 = vpop.permute.xlu0 %598
  %v601 = vmul.f32 %v583, %v599
  %s602 = scalar_lea.vmem [#allocation2], 32
  %v603 = vld [vmem:[%s602] sm:$0xff]
  %605 = vrot.lane.b32.xlu0 %v601, 64
  %v606 = vpop.permute.xlu0 %605
  %v607 = vsel %vm49, %v606, 0
  %609 = vmatprep.subr.mxu0 0.0
  %610 = vmatpush1.msra.mxu0 0.0
  %611 = vmatprep.subr.mxu0 0.0
  %612 = vmatpush1.msra.mxu0 0.0
  %613 = vmatprep.subr.mxu0 0.0
  %614 = vmatpush1.msra.mxu0 0.0
  %615 = vmatprep.subr.mxu0 0.0
  %616 = vmatpush1.msra.mxu0 0.0
  %617 = vmatprep.subr.mxu0 0.0
  %618 = vmatpush1.msra.mxu0 0.0
  %619 = vmatprep.subr.mxu0 0.0
  %620 = vmatpush1.msra.mxu0 0.0
  %621 = vmatprep.subr.mxu0 0.0
  %622 = vmatpush1.msra.mxu0 0.0
  %623 = vmatprep.subr.mxu0 0.0
  %624 = vmatpush1.msra.mxu0 0.0
  %625 = vmatprep.subr.mxu0 0.0
  %626 = vmatpush1.msra.mxu0 0.0
  %627 = vmatprep.subr.mxu0 0.0
  %628 = vmatpush1.msra.mxu0 0.0
  %629 = vmatprep.subr.mxu0 0.0
  %630 = vmatpush1.msra.mxu0 0.0
  %631 = vmatprep.subr.mxu0 0.0
  %632 = vmatpush1.msra.mxu0 0.0
  %633 = vmatprep.subr.mxu0 0.0
  %634 = vmatpush1.msra.mxu0 %v190
  %635 = vmatprep.subr.mxu0 0.0
  %636 = vmatpush1.msra.mxu0 %v189
  %637 = vmatprep.subr.mxu0 0.0
  %638 = vmatpush1.msra.mxu0 %v188
  %639 = vmatprep.subr.mxu0 0.0
  %640 = vmatpush1.msra.mxu0 %v187
  %641 = vmatprep.subr.mxu0 0.0
  %642 = vmatpush2.msra.mxu0 0.0
  %643 = vmatprep.subr.mxu0 0.0
  %644 = vmatpush2.msra.mxu0 0.0
  %645 = vmatprep.subr.mxu0 0.0
  %646 = vmatpush2.msra.mxu0 0.0
  %647 = vmatprep.subr.mxu0 0.0
  %648 = vmatpush2.msra.mxu0 0.0
  %649 = vmatprep.subr.mxu0 0.0
  %650 = vmatpush2.msra.mxu0 0.0
  %651 = vmatprep.subr.mxu0 0.0
  %652 = vmatpush2.msra.mxu0 0.0
  %653 = vmatprep.subr.mxu0 0.0
  %654 = vmatpush2.msra.mxu0 0.0
  %655 = vmatprep.subr.mxu0 0.0
  %656 = vmatpush2.msra.mxu0 0.0
  %657 = vmatprep.subr.mxu0 0.0
  %658 = vmatpush2.msra.mxu0 0.0
  %659 = vmatprep.subr.mxu0 0.0
  %660 = vmatpush2.msra.mxu0 0.0
  %661 = vmatprep.subr.mxu0 0.0
  %662 = vmatpush2.msra.mxu0 0.0
  %663 = vmatprep.subr.mxu0 0.0
  %664 = vmatpush2.msra.mxu0 0.0
  %665 = vmatprep.subr.mxu0 0.0
  %666 = vmatpush2.msra.mxu0 0.0
  %667 = vmatprep.subr.mxu0 0.0
  %668 = vmatpush2.msra.mxu0 0.0
  %669 = vmatprep.subr.mxu0 0.0
  %670 = vmatpush2.msra.mxu0 0.0
  %671 = vmatprep.subr.mxu0 0.0
  %672 = vmatpush2.msra.mxu0 0.0
  %673 = vmatprep.mubr.f32.mxu0 0.0
  %674 = vmatmul.mubr.f32.gmra.mxu0 %v607
  %v675 = vpop.f32.mrf.mxu0
  %v676 = vadd.f32 0.0, %v675
  %v677 = vpop.f32.mrf.mxu0
  %678 = vdwg.mxu0
  %v679 = vadd.f32 %v603, %v676
  %v680 = vxor.u32 %v679, 2147483648
  %v681 = vmul.f32 %v680, 1.442695
  %v682 = vpow.pop %v681
  %v683 = vadd.f32 %v682, 1.0
  %v684 = vrcp.pop %v683
  %v685 = vmul.f32 1.0, %v684
  %v686 = vtanh.pop %v679
  %v687 = vmul.f32 %v685, %v595
  %689 = vrot.lane.b32.xlu0 %v686, 32
  %v690 = vpop.permute.xlu0 %689
  %v692 = vmul.f32 %v685, %v690
  %694 = vrot.lane.b32.xlu0 %v692, 32
  %v695 = vpop.permute.xlu0 %694
  %v697 = vadd.f32 %v687, %v695
  %v698 = vtanh.pop %v697
  %700 = vrot.lane.b32.xlu0 %v698, 32
  %v701 = vpop.permute.xlu0 %700
  %v703 = vmul.f32 %v685, %v701
  %s704 = scalar_lea.vmem [#allocation2], 40
  %v705 = vld [vmem:[%s704] sm:$0xff]
  %707 = vrot.lane.b32.xlu0 %v703, 64
  %v708 = vpop.permute.xlu0 %707
  %v709 = vsel %vm49, %v708, 0
  %711 = vmatprep.subr.mxu0 0.0
  %712 = vmatpush1.msra.mxu0 0.0
  %713 = vmatprep.subr.mxu0 0.0
  %714 = vmatpush1.msra.mxu0 0.0
  %715 = vmatprep.subr.mxu0 0.0
  %716 = vmatpush1.msra.mxu0 0.0
  %717 = vmatprep.subr.mxu0 0.0
  %718 = vmatpush1.msra.mxu0 0.0
  %719 = vmatprep.subr.mxu0 0.0
  %720 = vmatpush1.msra.mxu0 0.0
  %721 = vmatprep.subr.mxu0 0.0
  %722 = vmatpush1.msra.mxu0 0.0
  %723 = vmatprep.subr.mxu0 0.0
  %724 = vmatpush1.msra.mxu0 0.0
  %725 = vmatprep.subr.mxu0 0.0
  %726 = vmatpush1.msra.mxu0 0.0
  %727 = vmatprep.subr.mxu0 0.0
  %728 = vmatpush1.msra.mxu0 0.0
  %729 = vmatprep.subr.mxu0 0.0
  %730 = vmatpush1.msra.mxu0 0.0
  %731 = vmatprep.subr.mxu0 0.0
  %732 = vmatpush1.msra.mxu0 0.0
  %733 = vmatprep.subr.mxu0 0.0
  %734 = vmatpush1.msra.mxu0 0.0
  %735 = vmatprep.subr.mxu0 0.0
  %736 = vmatpush1.msra.mxu0 %v190
  %737 = vmatprep.subr.mxu0 0.0
  %738 = vmatpush1.msra.mxu0 %v189
  %739 = vmatprep.subr.mxu0 0.0
  %740 = vmatpush1.msra.mxu0 %v188
  %741 = vmatprep.subr.mxu0 0.0
  %742 = vmatpush1.msra.mxu0 %v187
  %743 = vmatprep.subr.mxu0 0.0
  %744 = vmatpush2.msra.mxu0 0.0
  %745 = vmatprep.subr.mxu0 0.0
  %746 = vmatpush2.msra.mxu0 0.0
  %747 = vmatprep.subr.mxu0 0.0
  %748 = vmatpush2.msra.mxu0 0.0
  %749 = vmatprep.subr.mxu0 0.0
  %750 = vmatpush2.msra.mxu0 0.0
  %751 = vmatprep.subr.mxu0 0.0
  %752 = vmatpush2.msra.mxu0 0.0
  %753 = vmatprep.subr.mxu0 0.0
  %754 = vmatpush2.msra.mxu0 0.0
  %755 = vmatprep.subr.mxu0 0.0
  %756 = vmatpush2.msra.mxu0 0.0
  %757 = vmatprep.subr.mxu0 0.0
  %758 = vmatpush2.msra.mxu0 0.0
  %759 = vmatprep.subr.mxu0 0.0
  %760 = vmatpush2.msra.mxu0 0.0
  %761 = vmatprep.subr.mxu0 0.0
  %762 = vmatpush2.msra.mxu0 0.0
  %763 = vmatprep.subr.mxu0 0.0
  %764 = vmatpush2.msra.mxu0 0.0
  %765 = vmatprep.subr.mxu0 0.0
  %766 = vmatpush2.msra.mxu0 0.0
  %767 = vmatprep.subr.mxu0 0.0
  %768 = vmatpush2.msra.mxu0 0.0
  %769 = vmatprep.subr.mxu0 0.0
  %770 = vmatpush2.msra.mxu0 0.0
  %771 = vmatprep.subr.mxu0 0.0
  %772 = vmatpush2.msra.mxu0 0.0
  %773 = vmatprep.subr.mxu0 0.0
  %774 = vmatpush2.msra.mxu0 0.0
  %775 = vmatprep.mubr.f32.mxu0 0.0
  %776 = vmatmul.mubr.f32.gmra.mxu0 %v709
  %v777 = vpop.f32.mrf.mxu0
  %v778 = vadd.f32 0.0, %v777
  %v779 = vpop.f32.mrf.mxu0
  %780 = vdwg.mxu0
  %v781 = vadd.f32 %v705, %v778
  %v782 = vxor.u32 %v781, 2147483648
  %v783 = vmul.f32 %v782, 1.442695
  %v784 = vpow.pop %v783
  %v785 = vadd.f32 %v784, 1.0
  %v786 = vrcp.pop %v785
  %v787 = vmul.f32 1.0, %v786
  %v788 = vtanh.pop %v781
  %v789 = vmul.f32 %v787, %v697
  %791 = vrot.lane.b32.xlu0 %v788, 32
  %v792 = vpop.permute.xlu0 %791
  %v794 = vmul.f32 %v787, %v792
  %796 = vrot.lane.b32.xlu0 %v794, 32
  %v797 = vpop.permute.xlu0 %796
  %v799 = vadd.f32 %v789, %v797
  %v800 = vtanh.pop %v799
  %802 = vrot.lane.b32.xlu0 %v800, 32
  %v803 = vpop.permute.xlu0 %802
  %v805 = vmul.f32 %v787, %v803
  %s806 = scalar_lea.vmem [#allocation2], 48
  %v807 = vld [vmem:[%s806] sm:$0xff]
  %809 = vrot.lane.b32.xlu0 %v805, 64
  %v810 = vpop.permute.xlu0 %809
  %v811 = vsel %vm49, %v810, 0
  %813 = vmatprep.subr.mxu0 0.0
  %814 = vmatpush1.msra.mxu0 0.0
  %815 = vmatprep.subr.mxu0 0.0
  %816 = vmatpush1.msra.mxu0 0.0
  %817 = vmatprep.subr.mxu0 0.0
  %818 = vmatpush1.msra.mxu0 0.0
  %819 = vmatprep.subr.mxu0 0.0
  %820 = vmatpush1.msra.mxu0 0.0
  %821 = vmatprep.subr.mxu0 0.0
  %822 = vmatpush1.msra.mxu0 0.0
  %823 = vmatprep.subr.mxu0 0.0
  %824 = vmatpush1.msra.mxu0 0.0
  %825 = vmatprep.subr.mxu0 0.0
  %826 = vmatpush1.msra.mxu0 0.0
  %827 = vmatprep.subr.mxu0 0.0
  %828 = vmatpush1.msra.mxu0 0.0
  %829 = vmatprep.subr.mxu0 0.0
  %830 = vmatpush1.msra.mxu0 0.0
  %831 = vmatprep.subr.mxu0 0.0
  %832 = vmatpush1.msra.mxu0 0.0
  %833 = vmatprep.subr.mxu0 0.0
  %834 = vmatpush1.msra.mxu0 0.0
  %835 = vmatprep.subr.mxu0 0.0
  %836 = vmatpush1.msra.mxu0 0.0
  %837 = vmatprep.subr.mxu0 0.0
  %838 = vmatpush1.msra.mxu0 %v190
  %839 = vmatprep.subr.mxu0 0.0
  %840 = vmatpush1.msra.mxu0 %v189
  %841 = vmatprep.subr.mxu0 0.0
  %842 = vmatpush1.msra.mxu0 %v188
  %843 = vmatprep.subr.mxu0 0.0
  %844 = vmatpush1.msra.mxu0 %v187
  %845 = vmatprep.subr.mxu0 0.0
  %846 = vmatpush2.msra.mxu0 0.0
  %847 = vmatprep.subr.mxu0 0.0
  %848 = vmatpush2.msra.mxu0 0.0
  %849 = vmatprep.subr.mxu0 0.0
  %850 = vmatpush2.msra.mxu0 0.0
  %851 = vmatprep.subr.mxu0 0.0
  %852 = vmatpush2.msra.mxu0 0.0
  %853 = vmatprep.subr.mxu0 0.0
  %854 = vmatpush2.msra.mxu0 0.0
  %855 = vmatprep.subr.mxu0 0.0
  %856 = vmatpush2.msra.mxu0 0.0
  %857 = vmatprep.subr.mxu0 0.0
  %858 = vmatpush2.msra.mxu0 0.0
  %859 = vmatprep.subr.mxu0 0.0
  %860 = vmatpush2.msra.mxu0 0.0
  %861 = vmatprep.subr.mxu0 0.0
  %862 = vmatpush2.msra.mxu0 0.0
  %863 = vmatprep.subr.mxu0 0.0
  %864 = vmatpush2.msra.mxu0 0.0
  %865 = vmatprep.subr.mxu0 0.0
  %866 = vmatpush2.msra.mxu0 0.0
  %867 = vmatprep.subr.mxu0 0.0
  %868 = vmatpush2.msra.mxu0 0.0
  %869 = vmatprep.subr.mxu0 0.0
  %870 = vmatpush2.msra.mxu0 0.0
  %871 = vmatprep.subr.mxu0 0.0
  %872 = vmatpush2.msra.mxu0 0.0
  %873 = vmatprep.subr.mxu0 0.0
  %874 = vmatpush2.msra.mxu0 0.0
  %875 = vmatprep.subr.mxu0 0.0
  %876 = vmatpush2.msra.mxu0 0.0
  %877 = vmatprep.mubr.f32.mxu0 0.0
  %878 = vmatmul.mubr.f32.gmra.mxu0 %v811
  %v879 = vpop.f32.mrf.mxu0
  %v880 = vadd.f32 0.0, %v879
  %v881 = vpop.f32.mrf.mxu0
  %882 = vdwg.mxu0
  %v883 = vadd.f32 %v807, %v880
  %v884 = vxor.u32 %v883, 2147483648
  %v885 = vmul.f32 %v884, 1.442695
  %v886 = vpow.pop %v885
  %v887 = vadd.f32 %v886, 1.0
  %v888 = vrcp.pop %v887
  %v889 = vmul.f32 1.0, %v888
  %v890 = vtanh.pop %v883
  %v891 = vmul.f32 %v889, %v799
  %893 = vrot.lane.b32.xlu0 %v890, 32
  %v894 = vpop.permute.xlu0 %893
  %v896 = vmul.f32 %v889, %v894
  %898 = vrot.lane.b32.xlu0 %v896, 32
  %v899 = vpop.permute.xlu0 %898
  %v901 = vadd.f32 %v891, %v899
  %v902 = vtanh.pop %v901
  %904 = vrot.lane.b32.xlu0 %v902, 32
  %v905 = vpop.permute.xlu0 %904
  %v907 = vmul.f32 %v889, %v905
  %s908 = scalar_lea.vmem [#allocation2], 56
  %v909 = vld [vmem:[%s908] sm:$0xff]
  %911 = vrot.lane.b32.xlu0 %v907, 64
  %v912 = vpop.permute.xlu0 %911
  %v913 = vsel %vm49, %v912, 0
  %915 = vmatprep.subr.mxu0 0.0
  %916 = vmatpush1.msra.mxu0 0.0
  %917 = vmatprep.subr.mxu0 0.0
  %918 = vmatpush1.msra.mxu0 0.0
  %919 = vmatprep.subr.mxu0 0.0
  %920 = vmatpush1.msra.mxu0 0.0
  %921 = vmatprep.subr.mxu0 0.0
  %922 = vmatpush1.msra.mxu0 0.0
  %923 = vmatprep.subr.mxu0 0.0
  %924 = vmatpush1.msra.mxu0 0.0
  %925 = vmatprep.subr.mxu0 0.0
  %926 = vmatpush1.msra.mxu0 0.0
  %927 = vmatprep.subr.mxu0 0.0
  %928 = vmatpush1.msra.mxu0 0.0
  %929 = vmatprep.subr.mxu0 0.0
  %930 = vmatpush1.msra.mxu0 0.0
  %931 = vmatprep.subr.mxu0 0.0
  %932 = vmatpush1.msra.mxu0 0.0
  %933 = vmatprep.subr.mxu0 0.0
  %934 = vmatpush1.msra.mxu0 0.0
  %935 = vmatprep.subr.mxu0 0.0
  %936 = vmatpush1.msra.mxu0 0.0
  %937 = vmatprep.subr.mxu0 0.0
  %938 = vmatpush1.msra.mxu0 0.0
  %939 = vmatprep.subr.mxu0 0.0
  %940 = vmatpush1.msra.mxu0 %v190
  %941 = vmatprep.subr.mxu0 0.0
  %942 = vmatpush1.msra.mxu0 %v189
  %943 = vmatprep.subr.mxu0 0.0
  %944 = vmatpush1.msra.mxu0 %v188
  %945 = vmatprep.subr.mxu0 0.0
  %946 = vmatpush1.msra.mxu0 %v187
  %947 = vmatprep.subr.mxu0 0.0
  %948 = vmatpush2.msra.mxu0 0.0
  %949 = vmatprep.subr.mxu0 0.0
  %950 = vmatpush2.msra.mxu0 0.0
  %951 = vmatprep.subr.mxu0 0.0
  %952 = vmatpush2.msra.mxu0 0.0
  %953 = vmatprep.subr.mxu0 0.0
  %954 = vmatpush2.msra.mxu0 0.0
  %955 = vmatprep.subr.mxu0 0.0
  %956 = vmatpush2.msra.mxu0 0.0
  %957 = vmatprep.subr.mxu0 0.0
  %958 = vmatpush2.msra.mxu0 0.0
  %959 = vmatprep.subr.mxu0 0.0
  %960 = vmatpush2.msra.mxu0 0.0
  %961 = vmatprep.subr.mxu0 0.0
  %962 = vmatpush2.msra.mxu0 0.0
  %963 = vmatprep.subr.mxu0 0.0
  %964 = vmatpush2.msra.mxu0 0.0
  %965 = vmatprep.subr.mxu0 0.0
  %966 = vmatpush2.msra.mxu0 0.0
  %967 = vmatprep.subr.mxu0 0.0
  %968 = vmatpush2.msra.mxu0 0.0
  %969 = vmatprep.subr.mxu0 0.0
  %970 = vmatpush2.msra.mxu0 0.0
  %971 = vmatprep.subr.mxu0 0.0
  %972 = vmatpush2.msra.mxu0 0.0
  %973 = vmatprep.subr.mxu0 0.0
  %974 = vmatpush2.msra.mxu0 0.0
  %975 = vmatprep.subr.mxu0 0.0
  %976 = vmatpush2.msra.mxu0 0.0
  %977 = vmatprep.subr.mxu0 0.0
  %978 = vmatpush2.msra.mxu0 0.0
  %979 = vmatprep.mubr.f32.mxu0 0.0
  %980 = vmatmul.mubr.f32.gmra.mxu0 %v913
  %v981 = vpop.f32.mrf.mxu0
  %v982 = vadd.f32 0.0, %v981
  %v983 = vpop.f32.mrf.mxu0
  %984 = vdwg.mxu0
  %v985 = vadd.f32 %v909, %v982
  %v986 = vxor.u32 %v985, 2147483648
  %v987 = vmul.f32 %v986, 1.442695
  %v988 = vpow.pop %v987
  %v989 = vadd.f32 %v988, 1.0
  %v990 = vrcp.pop %v989
  %v991 = vmul.f32 1.0, %v990
  %v992 = vtanh.pop %v985
  %v993 = vmul.f32 %v991, %v901
  %995 = vrot.lane.b32.xlu0 %v992, 32
  %v996 = vpop.permute.xlu0 %995
  %v998 = vmul.f32 %v991, %v996
  %1000 = vrot.lane.b32.xlu0 %v998, 32
  %v1001 = vpop.permute.xlu0 %1000
  %v1003 = vadd.f32 %v993, %v1001
  %v1004 = vtanh.pop %v1003
  %1006 = vrot.lane.b32.xlu0 %v1004, 32
  %v1007 = vpop.permute.xlu0 %1006
  %v1009 = vmul.f32 %v991, %v1007
  %1011 = vrot.lane.b32.xlu0 %v1009, 64
  %v1012 = vpop.permute.xlu0 %1011
  %1014 = vst.msk [vmem:[#allocation3] sm:$0xff] %vm49, %v1012
  %1016 = vrot.lane.b32.xlu0 %v1003, 96
  %v1017 = vpop.permute.xlu0 %1016
  %1019 = vst.msk [vmem:[#allocation4] sm:$0xff] %vm49, %v1017
  // Predicated region
  $region30: #{lstm_model_forward.3} parent=0 // pred_check
    %p1020 = pneg %p23
  $region31: #{lstm_model_forward.3} parent=0 // pred_check_branch
    %1022 = sbr.rel (%p1020) target = $region33
  $region32: #{lstm_model_forward.3} parent=0 // pred_region
    %v1023 = vld [vmem:[%s4] sm:$0xff]
    %v1024 = vld [vmem:[%s4 + $0x8] sm:$0xff]
    %v1025 = vld [vmem:[%s4 + $0x10] sm:$0xff]
    %v1026 = vld [vmem:[%s4 + $0x18] sm:$0xff]
    %v1027 = vld [vmem:[%s5] sm:$0x1]
    %v1029 = vlaneseq
    %v1030 = vshrl.u32 %v1029, 7
    %v1031 = vsub.s32 0, %v1030
    %v1032 = vrot.slane %v1027, %v1031
    %v1034 = vsel %vm49, %v1012, 0
    %1036 = vmatprep.subr.mxu0 0.0
    %1037 = vmatpush1.msra.mxu0 0.0
    %1038 = vmatprep.subr.mxu0 0.0
    %1039 = vmatpush1.msra.mxu0 0.0
    %1040 = vmatprep.subr.mxu0 0.0
    %1041 = vmatpush1.msra.mxu0 0.0
    %1042 = vmatprep.subr.mxu0 0.0
    %1043 = vmatpush1.msra.mxu0 0.0
    %1044 = vmatprep.subr.mxu0 0.0
    %1045 = vmatpush1.msra.mxu0 0.0
    %1046 = vmatprep.subr.mxu0 0.0
    %1047 = vmatpush1.msra.mxu0 0.0
    %1048 = vmatprep.subr.mxu0 0.0
    %1049 = vmatpush1.msra.mxu0 0.0
    %1050 = vmatprep.subr.mxu0 0.0
    %1051 = vmatpush1.msra.mxu0 0.0
    %1052 = vmatprep.subr.mxu0 0.0
    %1053 = vmatpush1.msra.mxu0 0.0
    %1054 = vmatprep.subr.mxu0 0.0
    %1055 = vmatpush1.msra.mxu0 0.0
    %1056 = vmatprep.subr.mxu0 0.0
    %1057 = vmatpush1.msra.mxu0 0.0
    %1058 = vmatprep.subr.mxu0 0.0
    %1059 = vmatpush1.msra.mxu0 0.0
    %1060 = vmatprep.subr.mxu0 0.0
    %1061 = vmatpush1.msra.mxu0 %v1026
    %1062 = vmatprep.subr.mxu0 0.0
    %1063 = vmatpush1.msra.mxu0 %v1025
    %1064 = vmatprep.subr.mxu0 0.0
    %1065 = vmatpush1.msra.mxu0 %v1024
    %1066 = vmatprep.subr.mxu0 0.0
    %1067 = vmatpush1.msra.mxu0 %v1023
    %1068 = vmatprep.subr.mxu0 0.0
    %1069 = vmatpush2.msra.mxu0 0.0
    %1070 = vmatprep.subr.mxu0 0.0
    %1071 = vmatpush2.msra.mxu0 0.0
    %1072 = vmatprep.subr.mxu0 0.0
    %1073 = vmatpush2.msra.mxu0 0.0
    %1074 = vmatprep.subr.mxu0 0.0
    %1075 = vmatpush2.msra.mxu0 0.0
    %1076 = vmatprep.subr.mxu0 0.0
    %1077 = vmatpush2.msra.mxu0 0.0
    %1078 = vmatprep.subr.mxu0 0.0
    %1079 = vmatpush2.msra.mxu0 0.0
    %1080 = vmatprep.subr.mxu0 0.0
    %1081 = vmatpush2.msra.mxu0 0.0
    %1082 = vmatprep.subr.mxu0 0.0
    %1083 = vmatpush2.msra.mxu0 0.0
    %1084 = vmatprep.subr.mxu0 0.0
    %1085 = vmatpush2.msra.mxu0 0.0
    %1086 = vmatprep.subr.mxu0 0.0
    %1087 = vmatpush2.msra.mxu0 0.0
    %1088 = vmatprep.subr.mxu0 0.0
    %1089 = vmatpush2.msra.mxu0 0.0
    %1090 = vmatprep.subr.mxu0 0.0
    %1091 = vmatpush2.msra.mxu0 0.0
    %1092 = vmatprep.subr.mxu0 0.0
    %1093 = vmatpush2.msra.mxu0 0.0
    %1094 = vmatprep.subr.mxu0 0.0
    %1095 = vmatpush2.msra.mxu0 0.0
    %1096 = vmatprep.subr.mxu0 0.0
    %1097 = vmatpush2.msra.mxu0 0.0
    %1098 = vmatprep.subr.mxu0 0.0
    %1099 = vmatpush2.msra.mxu0 0.0
    %1100 = vmatprep.mubr.f32.mxu0 0.0
    %1101 = vmatmul.mubr.f32.gmra.mxu0 %v1034
    %v1102 = vpop.f32.mrf.mxu0
    %v1103 = vadd.f32 %v1032, %v1102
    %v1104 = vpop.f32.mrf.mxu0
    %1105 = vdwg.mxu0
    %vm1106 = vcmask 31744
    %1107 = vst.msk [vmem:[%s6] sm:$0xff] %vm1106, %v1103
  $region33: #{lstm_model_forward.3} parent=0 // pred_fallthru
    _
  // Predicated region
  $region34: #{lstm_model_forward.3} parent=0 // pred_check
    _
  $region35: #{lstm_model_forward.3} parent=0 // pred_check_branch
    %1109 = sbr.rel (0) target = $region37
  $region36: #{lstm_model_forward.3} parent=0 // pred_region
    _
  $region37: #{lstm_model_forward.3} parent=0 // pred_fallthru
    _
  // Predicated region
  $region38: #{lstm_model_forward.3} parent=0 // pred_check
    _
  $region39: #{lstm_model_forward.3} parent=0 // pred_check_branch
    %1111 = sbr.rel (0) target = $region41
  $region40: #{lstm_model_forward.3} parent=0 // pred_region
    _
  $region41: #{lstm_model_forward.3} parent=0 // pred_fallthru
    _

</llo_original>
